<compile_context>
chip_gen: v7x
topology: tpu7x:2x2x1
jax: 0.10.0
libtpu: 0.0.40
codegen_flags: <defaults>
</compile_context>

<pallas_src>
import functools

import jax
import jax.numpy as jnp
from jax.experimental import pallas as pl
from jax.experimental.pallas import tpu as pltpu


def _pick_tile(n, cap):
    """Largest divisor of n that is <= cap (always >= 1).

    Replaces the old "fall back to the full size" behaviour that could blow up
    the unroll factor / VMEM when n is prime-ish."""
    for c in range(min(cap, n), 0, -1):
        if n % c == 0:
            return c
    return 1


def _const_weight_spec(block_shape, index_map):
    """BlockSpec for a grid-invariant operand (weights / biases).

    Single-buffered (pl.Buffered(1)) when supported: double-buffering a block
    whose index never changes only doubles resident VMEM."""
    buffered = getattr(pl, "Buffered", None)
    if buffered is not None:
        try:
            return pl.BlockSpec(block_shape, index_map, pipeline_mode=buffered(1))
        except TypeError:  # older Pallas without pipeline_mode
            pass
    return pl.BlockSpec(block_shape, index_map)


def _vmem_limit_bytes(chunk, b_tile, in_size, hidden, in_dtype, out_dtype):
    """VMEM budget derived from the actual block sizes (not a hard-coded 32 MiB).

    Assumes worst-case double buffering, 2x headroom for compiler temporaries,
    clamped to [32 MiB, 64 MiB] so it is valid on v5e/v6e (128 MiB) and v7x (64 MiB)."""
    g3 = 3 * hidden
    ib = jnp.dtype(in_dtype).itemsize
    ob = jnp.dtype(out_dtype).itemsize
    need = (
        2 * chunk * b_tile * in_size * ib          # x block (double-buffered)
        + 2 * (in_size + hidden) * g3 * 2          # bf16 weights
        + 2 * 2 * g3 * 4                           # f32 biases
        + 2 * chunk * b_tile * hidden * ob         # output block
        + 2 * b_tile * hidden * ob                 # final-hidden block
        + b_tile * hidden * 4                      # h scratch
        + chunk * b_tile * g3 * 4                  # GI scratch
    )
    need = 2 * need + (4 << 20)
    return int(min(max(need, 32 << 20), 64 << 20))


# --------------------------------------------------------------------------- #
# Fused per-layer kernel: chunk input projection + unrolled recurrence
# --------------------------------------------------------------------------- #
def _gru_layer_kernel(x_ref, wi_ref, bi_ref, wh_ref, bh_ref,
                      out_ref, hN_ref, h_scratch, gi_scratch,
                      *, hidden_size, chunk):
    # x_ref  : (chunk, Bt, I)  time-major layer input (leading axis = time)
    # wi_ref : (I, 3H) bf16    W_ih^T   (grid-invariant, single-buffered)
    # bi_ref : (1, 3H) f32     b_ih
    # wh_ref : (H, 3H) bf16    W_hh^T
    # bh_ref : (1, 3H) f32     b_hh
    # out_ref: (chunk, Bt, H)  per-step hidden outputs (time-major)
    # hN_ref : (Bt, H)         final hidden (written on the last chunk only)
    # h_scratch : (Bt, H) f32          carried hidden state
    # gi_scratch: (chunk, Bt, 3H) f32  this chunk's input projection
    c = pl.program_id(1)
    H = hidden_size
    Bt = x_ref.shape[1]
    I = x_ref.shape[2]

    @pl.when(c == 0)
    def _():
        h_scratch[...] = jnp.zeros_like(h_scratch)

    # ---- Hoisted input projection for the whole chunk: one bf16 MXU matmul,
    #      f32 accumulate, result parked in VMEM (bounds live ranges).
    x2 = x_ref[...].reshape(chunk * Bt, I).astype(jnp.bfloat16)
    gi = jnp.dot(x2, wi_ref[...], preferred_element_type=jnp.float32)
    gi_scratch[...] = (gi + bi_ref[...]).reshape(chunk, Bt, 3 * H)

    # ---- Sequential recurrence over the chunk (statically unrolled, chunk is
    #      capped in the wrapper so the body fits the vreg file comfortably).
    wh = wh_ref[...]          # (H, 3H) bf16, hoisted out of the loop
    bh = bh_ref[...]          # (1, 3H) f32
    h = h_scratch[...]        # (Bt, H) f32

    for k in range(chunk):
        gi_t = gi_scratch[k]                                    # (Bt, 3H) leading-axis load
        gh = jnp.dot(h.astype(jnp.bfloat16), wh,
                     preferred_element_type=jnp.float32) + bh   # (Bt, 3H) f32
        # TODO(synk): for production, pad H to a multiple of 128 (zero-padded
        #             weights/biases) so these gate slices are lane-tile aligned.
        i_r, i_z, i_n = gi_t[:, 0:H], gi_t[:, H:2 * H], gi_t[:, 2 * H:3 * H]
        h_r, h_z, h_n = gh[:, 0:H], gh[:, H:2 * H], gh[:, 2 * H:3 * H]
        r = jax.nn.sigmoid(i_r + h_r)
        z = jax.nn.sigmoid(i_z + h_z)
        n = jnp.tanh(i_n + r * h_n)
        h = (1.0 - z) * n + z * h
        out_ref[k] = h.astype(out_ref.dtype)                    # leading-axis store

    h_scratch[...] = h

    @pl.when(c == pl.num_programs(1) - 1)
    def _():
        hN_ref[...] = h.astype(hN_ref.dtype)


def _gru_layer(x_tbi, wi_bf16, bi_f32, wh_bf16, bh_f32, hidden_size, out_dtype):
    """One GRU layer. x_tbi: (T, B, I) time-major -> (out (T, B, H), h_final (B, H))."""
    T, B, I = x_tbi.shape
    H = hidden_size
    G3 = 3 * H

    # Batch tile: split in two only when each half stays a sublane multiple, so
    # v7x's second TensorCore runs half of the independent recurrences.
    b_tile = B // 2 if (B >= 16 and B % 16 == 0) else B
    # Chunk (unroll factor): amortize per-grid-step overhead but cap the GI
    # scratch / straight-line body size so it never spills badly at large B*H.
    chunk_cap = max(1, min(32, (1 << 20) // max(1, b_tile * G3 * 4)))
    chunk = _pick_tile(T, chunk_cap)

    kernel = functools.partial(_gru_layer_kernel, hidden_size=H, chunk=chunk)

    out, h_final = pl.pallas_call(
        kernel,
        out_shape=(
            jax.ShapeDtypeStruct((T, B, H), out_dtype),   # time-major layer output
            jax.ShapeDtypeStruct((B, H), out_dtype),      # final hidden state
        ),
        grid_spec=pltpu.PrefetchScalarGridSpec(
            num_scalar_prefetch=0,
            grid=(B // b_tile, T // chunk),
            in_specs=[
                pl.BlockSpec((chunk, b_tile, I), lambda b, c: (c, b, 0)),
                _const_weight_spec((I, G3), lambda b, c: (0, 0)),   # W_ih^T (bf16)
                _const_weight_spec((1, G3), lambda b, c: (0, 0)),   # b_ih
                _const_weight_spec((H, G3), lambda b, c: (0, 0)),   # W_hh^T (bf16)
                _const_weight_spec((1, G3), lambda b, c: (0, 0)),   # b_hh
            ],
            out_specs=[
                pl.BlockSpec((chunk, b_tile, H), lambda b, c: (c, b, 0)),
                pl.BlockSpec((b_tile, H), lambda b, c: (b, 0)),
            ],
            scratch_shapes=[
                pltpu.VMEM((b_tile, H), jnp.float32),         # carried hidden state
                pltpu.VMEM((chunk, b_tile, G3), jnp.float32),  # chunk input projection
            ],
        ),
        compiler_params=pltpu.CompilerParams(
            dimension_semantics=("parallel", "arbitrary"),
            vmem_limit_bytes=_vmem_limit_bytes(chunk, b_tile, I, H,
                                               x_tbi.dtype, out_dtype),
        ),
    )(x_tbi, wi_bf16, bi_f32, wh_bf16, bh_f32)
    return out, h_final


# --------------------------------------------------------------------------- #
# Parameters / forward / reference
# --------------------------------------------------------------------------- #
def init_gru_params(key, input_size, hidden_size, num_layers, dtype=jnp.float32):
    """Deterministic init mimicking PyTorch: U(-1/sqrt(H), 1/sqrt(H))."""
    params = []
    bound = 1.0 / jnp.sqrt(jnp.float32(hidden_size))
    for layer in range(num_layers):
        in_sz = input_size if layer == 0 else hidden_size
        key, k1, k2, k3, k4 = jax.random.split(key, 5)
        w_ih = jax.random.uniform(k1, (3 * hidden_size, in_sz), dtype, -bound, bound)
        w_hh = jax.random.uniform(k2, (3 * hidden_size, hidden_size), dtype, -bound, bound)
        b_ih = jax.random.uniform(k3, (3 * hidden_size,), dtype, -bound, bound)
        b_hh = jax.random.uniform(k4, (3 * hidden_size,), dtype, -bound, bound)
        params.append((w_ih, w_hh, b_ih, b_hh))
    return params


def encoder_forward(x_bti, params, hidden_size):
    """PyTorch Encoder.forward equivalent (eval mode).

    x_bti: (B, T, input_size) batch_first input.
    Returns (output (B, T, H), hidden (num_layers, B, H)).
    """
    out_dtype = x_bti.dtype
    # One HBM transpose at the network boundary; layers stay time-major so all
    # per-step kernel accesses are leading-axis slices.
    x = jnp.transpose(x_bti, (1, 0, 2))          # (T, B, I)
    finals = []
    for (w_ih, w_hh, b_ih, b_hh) in params:
        wi = jnp.transpose(w_ih).astype(jnp.bfloat16)   # (I, 3H) bf16 MXU operand
        wh = jnp.transpose(w_hh).astype(jnp.bfloat16)   # (H, 3H) bf16 MXU operand
        bi = b_ih.reshape(1, -1).astype(jnp.float32)    # (1, 3H) f32 (gate math in f32)
        bh = b_hh.reshape(1, -1).astype(jnp.float32)    # (1, 3H)
        x, h_final = _gru_layer(x, wi, bi, wh, bh, hidden_size, out_dtype)
        finals.append(h_final)
    output = jnp.transpose(x, (1, 0, 2))         # back to batch-first (B, T, H)
    hidden = jnp.stack(finals, axis=0)           # (num_layers, B, H)
    return output, hidden


def _reference_forward(x_bti, params, hidden_size):
    """Pure-JAX f32 reference (lax.scan) for correctness checking."""
    x = jnp.transpose(x_bti, (1, 0, 2))
    finals = []
    for (w_ih, w_hh, b_ih, b_hh) in params:
        H = hidden_size
        B = x.shape[1]

        def step(h, x_t):
            gi = x_t @ w_ih.T + b_ih
            gh = h @ w_hh.T + b_hh
            i_r, i_z, i_n = gi[:, :H], gi[:, H:2 * H], gi[:, 2 * H:]
            h_r, h_z, h_n = gh[:, :H], gh[:, H:2 * H], gh[:, 2 * H:]
            r = jax.nn.sigmoid(i_r + h_r)
            z = jax.nn.sigmoid(i_z + h_z)
            n = jnp.tanh(i_n + r * h_n)
            h_new = (1.0 - z) * n + z * h
            return h_new, h_new

        h0 = jnp.zeros((B, H), x.dtype)
        h_last, outs = jax.lax.scan(step, h0, x)
        x = outs
        finals.append(h_last)
    return jnp.transpose(x, (1, 0, 2)), jnp.stack(finals, axis=0)


if __name__ == "__main__":
    # Small shapes consistent with the module: (B, T, input_size)
    B, T, INPUT_SIZE, HIDDEN_SIZE, NUM_LAYERS = 2, 8, 4, 32, 2

    key = jax.random.PRNGKey(0)
    key, xk = jax.random.split(key)
    x = jax.random.normal(xk, (B, T, INPUT_SIZE), jnp.float32)

    params = init_gru_params(key, INPUT_SIZE, HIDDEN_SIZE, NUM_LAYERS)

    output, hidden = encoder_forward(x, params, HIDDEN_SIZE)
    output = jax.block_until_ready(output)
    hidden = jax.block_until_ready(hidden)

    # Sanity check against the pure-f32 reference. Matmul operands are bf16 in
    # the kernel (MXU-native) while gate math stays f32, so tolerance is set
    # for bf16 operand rounding.
    ref_out, ref_hid = _reference_forward(x, params, HIDDEN_SIZE)
    assert output.shape == (B, T, HIDDEN_SIZE)
    assert hidden.shape == (NUM_LAYERS, B, HIDDEN_SIZE)
    assert jnp.allclose(output, ref_out, atol=3e-2, rtol=3e-2), (
        "max |out-ref| = %f" % float(jnp.max(jnp.abs(output - ref_out))))
    assert jnp.allclose(hidden, ref_hid, atol=3e-2, rtol=3e-2), (
        "max |hid-ref| = %f" % float(jnp.max(jnp.abs(hidden - ref_hid))))

    print("KERNEL_OK")
</pallas_src>

<mosaic_0001>
module attributes {stable_mosaic.version = 11 : i64} {
  func.func @_gru_layer_kernel(%arg0: i32, %arg1: i32, %arg2: memref<8x2x4xf32, #tpu.memory_space<vmem>>, %arg3: memref<4x96xbf16, #tpu.memory_space<vmem>>, %arg4: memref<1x96xf32, #tpu.memory_space<vmem>>, %arg5: memref<32x96xbf16, #tpu.memory_space<vmem>>, %arg6: memref<1x96xf32, #tpu.memory_space<vmem>>, %arg7: memref<8x2x32xf32, #tpu.memory_space<vmem>>, %arg8: memref<2x32xf32, #tpu.memory_space<vmem>>, %arg9: memref<2x32xf32, #tpu.memory_space<vmem>>, %arg10: memref<8x2x96xf32, #tpu.memory_space<vmem>>) attributes {dimension_semantics = [#tpu.dimension_semantics<parallel>, #tpu.dimension_semantics<arbitrary>], iteration_bounds = array<i64: 1, 1>, scalar_prefetch = 0 : i64, scratch_operands = 2 : i64, tpu.core_type = #tpu.core_type<tc>, window_params = [{transform_indices = @transform_0, window_bounds = array<i64: 8, 2, 4>}, {pipeline_mode = #tpu.pipeline_mode<synchronous>, transform_indices = @transform_1, window_bounds = array<i64: 4, 96>}, {pipeline_mode = #tpu.pipeline_mode<synchronous>, transform_indices = @transform_2, window_bounds = array<i64: 1, 96>}, {pipeline_mode = #tpu.pipeline_mode<synchronous>, transform_indices = @transform_3, window_bounds = array<i64: 32, 96>}, {pipeline_mode = #tpu.pipeline_mode<synchronous>, transform_indices = @transform_4, window_bounds = array<i64: 1, 96>}, {transform_indices = @transform_5, window_bounds = array<i64: 8, 2, 32>}, {transform_indices = @transform_6, window_bounds = array<i64: 2, 32>}]} {
    %c0_i32 = arith.constant 0 : i32
    %0 = arith.cmpi eq, %arg1, %c0_i32 : i32
    %1 = arith.extui %0 : i1 to i32
    %c0_i32_0 = arith.constant 0 : i32
    %2 = arith.cmpi ne, %1, %c0_i32_0 : i32
    scf.if %2 {
      %cst_93 = arith.constant 0.000000e+00 : f32
      %300 = vector.broadcast %cst_93 : f32 to vector<2x32xf32>
      %c0_94 = arith.constant 0 : index
      %c0_95 = arith.constant 0 : index
      %301 = vector.load %arg9[%c0_94, %c0_95] : memref<2x32xf32, #tpu.memory_space<vmem>>, vector<2x32xf32>
      tpu.vector_store %arg9[%c0_94, %c0_95], %300 {strides = array<i32>} : memref<2x32xf32, #tpu.memory_space<vmem>>, vector<2x32xf32>,
    } else {
    }
    %c0 = arith.constant 0 : index
    %c0_1 = arith.constant 0 : index
    %c0_2 = arith.constant 0 : index
    %3 = vector.load %arg2[%c0, %c0_1, %c0_2] : memref<8x2x4xf32, #tpu.memory_space<vmem>>, vector<8x2x4xf32>
    %4 = vector.shape_cast %3 : vector<8x2x4xf32> to vector<16x4xf32>
    %5 = arith.truncf %4 : vector<16x4xf32> to vector<16x4xbf16>
    %c0_3 = arith.constant 0 : index
    %c0_4 = arith.constant 0 : index
    %6 = vector.load %arg3[%c0_3, %c0_4] : memref<4x96xbf16, #tpu.memory_space<vmem>>, vector<4x96xbf16>
    %cst = arith.constant dense<0.000000e+00> : vector<16x96xf32>
    %7 = tpu.matmul %5, %6, %cst {dimension_numbers = #tpu.dot_dimension_numbers<[1], [0], [0], [1], [0, 0, 1, 1], [], []>} : vector<16x4xbf16>, vector<4x96xbf16>, vector<16x96xf32> -> vector<16x96xf32>
    %c0_5 = arith.constant 0 : index
    %c0_6 = arith.constant 0 : index
    %8 = vector.load %arg4[%c0_5, %c0_6] : memref<1x96xf32, #tpu.memory_space<vmem>>, vector<1x96xf32>
    %9 = vector.broadcast %8 : vector<1x96xf32> to vector<16x96xf32>
    %10 = arith.addf %7, %9 : vector<16x96xf32>
    %11 = vector.shape_cast %10 : vector<16x96xf32> to vector<8x2x96xf32>
    %c0_7 = arith.constant 0 : index
    %c0_8 = arith.constant 0 : index
    %c0_9 = arith.constant 0 : index
    %12 = vector.load %arg10[%c0_7, %c0_8, %c0_9] : memref<8x2x96xf32, #tpu.memory_space<vmem>>, vector<8x2x96xf32>
    tpu.vector_store %arg10[%c0_7, %c0_8, %c0_9], %11 {strides = array<i32>} : memref<8x2x96xf32, #tpu.memory_space<vmem>>, vector<8x2x96xf32>,
    %c0_10 = arith.constant 0 : index
    %c0_11 = arith.constant 0 : index
    %13 = vector.load %arg5[%c0_10, %c0_11] : memref<32x96xbf16, #tpu.memory_space<vmem>>, vector<32x96xbf16>
    %c0_12 = arith.constant 0 : index
    %c0_13 = arith.constant 0 : index
    %14 = vector.load %arg6[%c0_12, %c0_13] : memref<1x96xf32, #tpu.memory_space<vmem>>, vector<1x96xf32>
    %c0_14 = arith.constant 0 : index
    %c0_15 = arith.constant 0 : index
    %15 = vector.load %arg9[%c0_14, %c0_15] : memref<2x32xf32, #tpu.memory_space<vmem>>, vector<2x32xf32>
    %c0_16 = arith.constant 0 : index
    %c0_17 = arith.constant 0 : index
    %c0_18 = arith.constant 0 : index
    %16 = vector.load %arg10[%c0_16, %c0_17, %c0_18] : memref<8x2x96xf32, #tpu.memory_space<vmem>>, vector<1x2x96xf32>
    %17 = vector.shape_cast %16 : vector<1x2x96xf32> to vector<2x96xf32>
    %18 = arith.truncf %15 : vector<2x32xf32> to vector<2x32xbf16>
    %cst_19 = arith.constant dense<0.000000e+00> : vector<2x96xf32>
    %19 = tpu.matmul %18, %13, %cst_19 {dimension_numbers = #tpu.dot_dimension_numbers<[1], [0], [0], [1], [0, 0, 1, 1], [], []>} : vector<2x32xbf16>, vector<32x96xbf16>, vector<2x96xf32> -> vector<2x96xf32>
    %20 = vector.broadcast %14 : vector<1x96xf32> to vector<2x96xf32>
    %21 = arith.addf %19, %20 : vector<2x96xf32>
    %22 = vector.extract_strided_slice %17 {offsets = [0, 0], sizes = [2, 32], strides = [1, 1]} : vector<2x96xf32> to vector<2x32xf32>
    %23 = vector.extract_strided_slice %17 {offsets = [0, 32], sizes = [2, 32], strides = [1, 1]} : vector<2x96xf32> to vector<2x32xf32>
    %24 = vector.extract_strided_slice %17 {offsets = [0, 64], sizes = [2, 32], strides = [1, 1]} : vector<2x96xf32> to vector<2x32xf32>
    %25 = vector.extract_strided_slice %21 {offsets = [0, 0], sizes = [2, 32], strides = [1, 1]} : vector<2x96xf32> to vector<2x32xf32>
    %26 = vector.extract_strided_slice %21 {offsets = [0, 32], sizes = [2, 32], strides = [1, 1]} : vector<2x96xf32> to vector<2x32xf32>
    %27 = vector.extract_strided_slice %21 {offsets = [0, 64], sizes = [2, 32], strides = [1, 1]} : vector<2x96xf32> to vector<2x32xf32>
    %28 = arith.addf %22, %25 : vector<2x32xf32>
    %29 = arith.negf %28 : vector<2x32xf32>
    %30 = math.exp %29 : vector<2x32xf32>
    %cst_20 = arith.constant 1.000000e+00 : f32
    %31 = vector.broadcast %cst_20 : f32 to vector<2x32xf32>
    %32 = arith.addf %31, %30 : vector<2x32xf32>
    %33 = arith.divf %31, %32 : vector<2x32xf32>
    %34 = arith.addf %23, %26 : vector<2x32xf32>
    %35 = arith.negf %34 : vector<2x32xf32>
    %36 = math.exp %35 : vector<2x32xf32>
    %cst_21 = arith.constant 1.000000e+00 : f32
    %37 = vector.broadcast %cst_21 : f32 to vector<2x32xf32>
    %38 = arith.addf %37, %36 : vector<2x32xf32>
    %39 = arith.divf %37, %38 : vector<2x32xf32>
    %40 = arith.mulf %33, %27 : vector<2x32xf32>
    %41 = arith.addf %24, %40 : vector<2x32xf32>
    %42 = math.tanh %41 : vector<2x32xf32>
    %cst_22 = arith.constant 1.000000e+00 : f32
    %43 = vector.broadcast %cst_22 : f32 to vector<2x32xf32>
    %44 = arith.subf %43, %39 : vector<2x32xf32>
    %45 = arith.mulf %44, %42 : vector<2x32xf32>
    %46 = arith.mulf %39, %15 : vector<2x32xf32>
    %47 = arith.addf %45, %46 : vector<2x32xf32>
    %c0_23 = arith.constant 0 : index
    %c0_24 = arith.constant 0 : index
    %c0_25 = arith.constant 0 : index
    %48 = vector.load %arg7[%c0_23, %c0_24, %c0_25] : memref<8x2x32xf32, #tpu.memory_space<vmem>>, vector<1x2x32xf32>
    %49 = vector.shape_cast %48 : vector<1x2x32xf32> to vector<2x32xf32>
    %50 = vector.shape_cast %47 : vector<2x32xf32> to vector<1x2x32xf32>
    tpu.vector_store %arg7[%c0_23, %c0_24, %c0_25], %50 {strides = array<i32>} : memref<8x2x32xf32, #tpu.memory_space<vmem>>, vector<1x2x32xf32>,
    %c1 = arith.constant 1 : index
    %c0_26 = arith.constant 0 : index
    %c0_27 = arith.constant 0 : index
    %51 = vector.load %arg10[%c1, %c0_26, %c0_27] : memref<8x2x96xf32, #tpu.memory_space<vmem>>, vector<1x2x96xf32>
    %52 = vector.shape_cast %51 : vector<1x2x96xf32> to vector<2x96xf32>
    %53 = arith.truncf %47 : vector<2x32xf32> to vector<2x32xbf16>
    %cst_28 = arith.constant dense<0.000000e+00> : vector<2x96xf32>
    %54 = tpu.matmul %53, %13, %cst_28 {dimension_numbers = #tpu.dot_dimension_numbers<[1], [0], [0], [1], [0, 0, 1, 1], [], []>} : vector<2x32xbf16>, vector<32x96xbf16>, vector<2x96xf32> -> vector<2x96xf32>
    %55 = vector.broadcast %14 : vector<1x96xf32> to vector<2x96xf32>
    %56 = arith.addf %54, %55 : vector<2x96xf32>
    %57 = vector.extract_strided_slice %52 {offsets = [0, 0], sizes = [2, 32], strides = [1, 1]} : vector<2x96xf32> to vector<2x32xf32>
    %58 = vector.extract_strided_slice %52 {offsets = [0, 32], sizes = [2, 32], strides = [1, 1]} : vector<2x96xf32> to vector<2x32xf32>
    %59 = vector.extract_strided_slice %52 {offsets = [0, 64], sizes = [2, 32], strides = [1, 1]} : vector<2x96xf32> to vector<2x32xf32>
    %60 = vector.extract_strided_slice %56 {offsets = [0, 0], sizes = [2, 32], strides = [1, 1]} : vector<2x96xf32> to vector<2x32xf32>
    %61 = vector.extract_strided_slice %56 {offsets = [0, 32], sizes = [2, 32], strides = [1, 1]} : vector<2x96xf32> to vector<2x32xf32>
    %62 = vector.extract_strided_slice %56 {offsets = [0, 64], sizes = [2, 32], strides = [1, 1]} : vector<2x96xf32> to vector<2x32xf32>
    %63 = arith.addf %57, %60 : vector<2x32xf32>
    %64 = arith.negf %63 : vector<2x32xf32>
    %65 = math.exp %64 : vector<2x32xf32>
    %cst_29 = arith.constant 1.000000e+00 : f32
    %66 = vector.broadcast %cst_29 : f32 to vector<2x32xf32>
    %67 = arith.addf %66, %65 : vector<2x32xf32>
    %68 = arith.divf %66, %67 : vector<2x32xf32>
    %69 = arith.addf %58, %61 : vector<2x32xf32>
    %70 = arith.negf %69 : vector<2x32xf32>
    %71 = math.exp %70 : vector<2x32xf32>
    %cst_30 = arith.constant 1.000000e+00 : f32
    %72 = vector.broadcast %cst_30 : f32 to vector<2x32xf32>
    %73 = arith.addf %72, %71 : vector<2x32xf32>
    %74 = arith.divf %72, %73 : vector<2x32xf32>
    %75 = arith.mulf %68, %62 : vector<2x32xf32>
    %76 = arith.addf %59, %75 : vector<2x32xf32>
    %77 = math.tanh %76 : vector<2x32xf32>
    %cst_31 = arith.constant 1.000000e+00 : f32
    %78 = vector.broadcast %cst_31 : f32 to vector<2x32xf32>
    %79 = arith.subf %78, %74 : vector<2x32xf32>
    %80 = arith.mulf %79, %77 : vector<2x32xf32>
    %81 = arith.mulf %74, %47 : vector<2x32xf32>
    %82 = arith.addf %80, %81 : vector<2x32xf32>
    %c1_32 = arith.constant 1 : index
    %c0_33 = arith.constant 0 : index
    %c0_34 = arith.constant 0 : index
    %83 = vector.load %arg7[%c1_32, %c0_33, %c0_34] : memref<8x2x32xf32, #tpu.memory_space<vmem>>, vector<1x2x32xf32>
    %84 = vector.shape_cast %83 : vector<1x2x32xf32> to vector<2x32xf32>
    %85 = vector.shape_cast %82 : vector<2x32xf32> to vector<1x2x32xf32>
    tpu.vector_store %arg7[%c1_32, %c0_33, %c0_34], %85 {strides = array<i32>} : memref<8x2x32xf32, #tpu.memory_space<vmem>>, vector<1x2x32xf32>,
    %c2 = arith.constant 2 : index
    %c0_35 = arith.constant 0 : index
    %c0_36 = arith.constant 0 : index
    %86 = vector.load %arg10[%c2, %c0_35, %c0_36] : memref<8x2x96xf32, #tpu.memory_space<vmem>>, vector<1x2x96xf32>
    %87 = vector.shape_cast %86 : vector<1x2x96xf32> to vector<2x96xf32>
    %88 = arith.truncf %82 : vector<2x32xf32> to vector<2x32xbf16>
    %cst_37 = arith.constant dense<0.000000e+00> : vector<2x96xf32>
    %89 = tpu.matmul %88, %13, %cst_37 {dimension_numbers = #tpu.dot_dimension_numbers<[1], [0], [0], [1], [0, 0, 1, 1], [], []>} : vector<2x32xbf16>, vector<32x96xbf16>, vector<2x96xf32> -> vector<2x96xf32>
    %90 = vector.broadcast %14 : vector<1x96xf32> to vector<2x96xf32>
    %91 = arith.addf %89, %90 : vector<2x96xf32>
    %92 = vector.extract_strided_slice %87 {offsets = [0, 0], sizes = [2, 32], strides = [1, 1]} : vector<2x96xf32> to vector<2x32xf32>
    %93 = vector.extract_strided_slice %87 {offsets = [0, 32], sizes = [2, 32], strides = [1, 1]} : vector<2x96xf32> to vector<2x32xf32>
    %94 = vector.extract_strided_slice %87 {offsets = [0, 64], sizes = [2, 32], strides = [1, 1]} : vector<2x96xf32> to vector<2x32xf32>
    %95 = vector.extract_strided_slice %91 {offsets = [0, 0], sizes = [2, 32], strides = [1, 1]} : vector<2x96xf32> to vector<2x32xf32>
    %96 = vector.extract_strided_slice %91 {offsets = [0, 32], sizes = [2, 32], strides = [1, 1]} : vector<2x96xf32> to vector<2x32xf32>
    %97 = vector.extract_strided_slice %91 {offsets = [0, 64], sizes = [2, 32], strides = [1, 1]} : vector<2x96xf32> to vector<2x32xf32>
    %98 = arith.addf %92, %95 : vector<2x32xf32>
    %99 = arith.negf %98 : vector<2x32xf32>
    %100 = math.exp %99 : vector<2x32xf32>
    %cst_38 = arith.constant 1.000000e+00 : f32
    %101 = vector.broadcast %cst_38 : f32 to vector<2x32xf32>
    %102 = arith.addf %101, %100 : vector<2x32xf32>
    %103 = arith.divf %101, %102 : vector<2x32xf32>
    %104 = arith.addf %93, %96 : vector<2x32xf32>
    %105 = arith.negf %104 : vector<2x32xf32>
    %106 = math.exp %105 : vector<2x32xf32>
    %cst_39 = arith.constant 1.000000e+00 : f32
    %107 = vector.broadcast %cst_39 : f32 to vector<2x32xf32>
    %108 = arith.addf %107, %106 : vector<2x32xf32>
    %109 = arith.divf %107, %108 : vector<2x32xf32>
    %110 = arith.mulf %103, %97 : vector<2x32xf32>
    %111 = arith.addf %94, %110 : vector<2x32xf32>
    %112 = math.tanh %111 : vector<2x32xf32>
    %cst_40 = arith.constant 1.000000e+00 : f32
    %113 = vector.broadcast %cst_40 : f32 to vector<2x32xf32>
    %114 = arith.subf %113, %109 : vector<2x32xf32>
    %115 = arith.mulf %114, %112 : vector<2x32xf32>
    %116 = arith.mulf %109, %82 : vector<2x32xf32>
    %117 = arith.addf %115, %116 : vector<2x32xf32>
    %c2_41 = arith.constant 2 : index
    %c0_42 = arith.constant 0 : index
    %c0_43 = arith.constant 0 : index
    %118 = vector.load %arg7[%c2_41, %c0_42, %c0_43] : memref<8x2x32xf32, #tpu.memory_space<vmem>>, vector<1x2x32xf32>
    %119 = vector.shape_cast %118 : vector<1x2x32xf32> to vector<2x32xf32>
    %120 = vector.shape_cast %117 : vector<2x32xf32> to vector<1x2x32xf32>
    tpu.vector_store %arg7[%c2_41, %c0_42, %c0_43], %120 {strides = array<i32>} : memref<8x2x32xf32, #tpu.memory_space<vmem>>, vector<1x2x32xf32>,
    %c3 = arith.constant 3 : index
    %c0_44 = arith.constant 0 : index
    %c0_45 = arith.constant 0 : index
    %121 = vector.load %arg10[%c3, %c0_44, %c0_45] : memref<8x2x96xf32, #tpu.memory_space<vmem>>, vector<1x2x96xf32>
    %122 = vector.shape_cast %121 : vector<1x2x96xf32> to vector<2x96xf32>
    %123 = arith.truncf %117 : vector<2x32xf32> to vector<2x32xbf16>
    %cst_46 = arith.constant dense<0.000000e+00> : vector<2x96xf32>
    %124 = tpu.matmul %123, %13, %cst_46 {dimension_numbers = #tpu.dot_dimension_numbers<[1], [0], [0], [1], [0, 0, 1, 1], [], []>} : vector<2x32xbf16>, vector<32x96xbf16>, vector<2x96xf32> -> vector<2x96xf32>
    %125 = vector.broadcast %14 : vector<1x96xf32> to vector<2x96xf32>
    %126 = arith.addf %124, %125 : vector<2x96xf32>
    %127 = vector.extract_strided_slice %122 {offsets = [0, 0], sizes = [2, 32], strides = [1, 1]} : vector<2x96xf32> to vector<2x32xf32>
    %128 = vector.extract_strided_slice %122 {offsets = [0, 32], sizes = [2, 32], strides = [1, 1]} : vector<2x96xf32> to vector<2x32xf32>
    %129 = vector.extract_strided_slice %122 {offsets = [0, 64], sizes = [2, 32], strides = [1, 1]} : vector<2x96xf32> to vector<2x32xf32>
    %130 = vector.extract_strided_slice %126 {offsets = [0, 0], sizes = [2, 32], strides = [1, 1]} : vector<2x96xf32> to vector<2x32xf32>
    %131 = vector.extract_strided_slice %126 {offsets = [0, 32], sizes = [2, 32], strides = [1, 1]} : vector<2x96xf32> to vector<2x32xf32>
    %132 = vector.extract_strided_slice %126 {offsets = [0, 64], sizes = [2, 32], strides = [1, 1]} : vector<2x96xf32> to vector<2x32xf32>
    %133 = arith.addf %127, %130 : vector<2x32xf32>
    %134 = arith.negf %133 : vector<2x32xf32>
    %135 = math.exp %134 : vector<2x32xf32>
    %cst_47 = arith.constant 1.000000e+00 : f32
    %136 = vector.broadcast %cst_47 : f32 to vector<2x32xf32>
    %137 = arith.addf %136, %135 : vector<2x32xf32>
    %138 = arith.divf %136, %137 : vector<2x32xf32>
    %139 = arith.addf %128, %131 : vector<2x32xf32>
    %140 = arith.negf %139 : vector<2x32xf32>
    %141 = math.exp %140 : vector<2x32xf32>
    %cst_48 = arith.constant 1.000000e+00 : f32
    %142 = vector.broadcast %cst_48 : f32 to vector<2x32xf32>
    %143 = arith.addf %142, %141 : vector<2x32xf32>
    %144 = arith.divf %142, %143 : vector<2x32xf32>
    %145 = arith.mulf %138, %132 : vector<2x32xf32>
    %146 = arith.addf %129, %145 : vector<2x32xf32>
    %147 = math.tanh %146 : vector<2x32xf32>
    %cst_49 = arith.constant 1.000000e+00 : f32
    %148 = vector.broadcast %cst_49 : f32 to vector<2x32xf32>
    %149 = arith.subf %148, %144 : vector<2x32xf32>
    %150 = arith.mulf %149, %147 : vector<2x32xf32>
    %151 = arith.mulf %144, %117 : vector<2x32xf32>
    %152 = arith.addf %150, %151 : vector<2x32xf32>
    %c3_50 = arith.constant 3 : index
    %c0_51 = arith.constant 0 : index
    %c0_52 = arith.constant 0 : index
    %153 = vector.load %arg7[%c3_50, %c0_51, %c0_52] : memref<8x2x32xf32, #tpu.memory_space<vmem>>, vector<1x2x32xf32>
    %154 = vector.shape_cast %153 : vector<1x2x32xf32> to vector<2x32xf32>
    %155 = vector.shape_cast %152 : vector<2x32xf32> to vector<1x2x32xf32>
    tpu.vector_store %arg7[%c3_50, %c0_51, %c0_52], %155 {strides = array<i32>} : memref<8x2x32xf32, #tpu.memory_space<vmem>>, vector<1x2x32xf32>,
    %c4 = arith.constant 4 : index
    %c0_53 = arith.constant 0 : index
    %c0_54 = arith.constant 0 : index
    %156 = vector.load %arg10[%c4, %c0_53, %c0_54] : memref<8x2x96xf32, #tpu.memory_space<vmem>>, vector<1x2x96xf32>
    %157 = vector.shape_cast %156 : vector<1x2x96xf32> to vector<2x96xf32>
    %158 = arith.truncf %152 : vector<2x32xf32> to vector<2x32xbf16>
    %cst_55 = arith.constant dense<0.000000e+00> : vector<2x96xf32>
    %159 = tpu.matmul %158, %13, %cst_55 {dimension_numbers = #tpu.dot_dimension_numbers<[1], [0], [0], [1], [0, 0, 1, 1], [], []>} : vector<2x32xbf16>, vector<32x96xbf16>, vector<2x96xf32> -> vector<2x96xf32>
    %160 = vector.broadcast %14 : vector<1x96xf32> to vector<2x96xf32>
    %161 = arith.addf %159, %160 : vector<2x96xf32>
    %162 = vector.extract_strided_slice %157 {offsets = [0, 0], sizes = [2, 32], strides = [1, 1]} : vector<2x96xf32> to vector<2x32xf32>
    %163 = vector.extract_strided_slice %157 {offsets = [0, 32], sizes = [2, 32], strides = [1, 1]} : vector<2x96xf32> to vector<2x32xf32>
    %164 = vector.extract_strided_slice %157 {offsets = [0, 64], sizes = [2, 32], strides = [1, 1]} : vector<2x96xf32> to vector<2x32xf32>
    %165 = vector.extract_strided_slice %161 {offsets = [0, 0], sizes = [2, 32], strides = [1, 1]} : vector<2x96xf32> to vector<2x32xf32>
    %166 = vector.extract_strided_slice %161 {offsets = [0, 32], sizes = [2, 32], strides = [1, 1]} : vector<2x96xf32> to vector<2x32xf32>
    %167 = vector.extract_strided_slice %161 {offsets = [0, 64], sizes = [2, 32], strides = [1, 1]} : vector<2x96xf32> to vector<2x32xf32>
    %168 = arith.addf %162, %165 : vector<2x32xf32>
    %169 = arith.negf %168 : vector<2x32xf32>
    %170 = math.exp %169 : vector<2x32xf32>
    %cst_56 = arith.constant 1.000000e+00 : f32
    %171 = vector.broadcast %cst_56 : f32 to vector<2x32xf32>
    %172 = arith.addf %171, %170 : vector<2x32xf32>
    %173 = arith.divf %171, %172 : vector<2x32xf32>
    %174 = arith.addf %163, %166 : vector<2x32xf32>
    %175 = arith.negf %174 : vector<2x32xf32>
    %176 = math.exp %175 : vector<2x32xf32>
    %cst_57 = arith.constant 1.000000e+00 : f32
    %177 = vector.broadcast %cst_57 : f32 to vector<2x32xf32>
    %178 = arith.addf %177, %176 : vector<2x32xf32>
    %179 = arith.divf %177, %178 : vector<2x32xf32>
    %180 = arith.mulf %173, %167 : vector<2x32xf32>
    %181 = arith.addf %164, %180 : vector<2x32xf32>
    %182 = math.tanh %181 : vector<2x32xf32>
    %cst_58 = arith.constant 1.000000e+00 : f32
    %183 = vector.broadcast %cst_58 : f32 to vector<2x32xf32>
    %184 = arith.subf %183, %179 : vector<2x32xf32>
    %185 = arith.mulf %184, %182 : vector<2x32xf32>
    %186 = arith.mulf %179, %152 : vector<2x32xf32>
    %187 = arith.addf %185, %186 : vector<2x32xf32>
    %c4_59 = arith.constant 4 : index
    %c0_60 = arith.constant 0 : index
    %c0_61 = arith.constant 0 : index
    %188 = vector.load %arg7[%c4_59, %c0_60, %c0_61] : memref<8x2x32xf32, #tpu.memory_space<vmem>>, vector<1x2x32xf32>
    %189 = vector.shape_cast %188 : vector<1x2x32xf32> to vector<2x32xf32>
    %190 = vector.shape_cast %187 : vector<2x32xf32> to vector<1x2x32xf32>
    tpu.vector_store %arg7[%c4_59, %c0_60, %c0_61], %190 {strides = array<i32>} : memref<8x2x32xf32, #tpu.memory_space<vmem>>, vector<1x2x32xf32>,
    %c5 = arith.constant 5 : index
    %c0_62 = arith.constant 0 : index
    %c0_63 = arith.constant 0 : index
    %191 = vector.load %arg10[%c5, %c0_62, %c0_63] : memref<8x2x96xf32, #tpu.memory_space<vmem>>, vector<1x2x96xf32>
    %192 = vector.shape_cast %191 : vector<1x2x96xf32> to vector<2x96xf32>
    %193 = arith.truncf %187 : vector<2x32xf32> to vector<2x32xbf16>
    %cst_64 = arith.constant dense<0.000000e+00> : vector<2x96xf32>
    %194 = tpu.matmul %193, %13, %cst_64 {dimension_numbers = #tpu.dot_dimension_numbers<[1], [0], [0], [1], [0, 0, 1, 1], [], []>} : vector<2x32xbf16>, vector<32x96xbf16>, vector<2x96xf32> -> vector<2x96xf32>
    %195 = vector.broadcast %14 : vector<1x96xf32> to vector<2x96xf32>
    %196 = arith.addf %194, %195 : vector<2x96xf32>
    %197 = vector.extract_strided_slice %192 {offsets = [0, 0], sizes = [2, 32], strides = [1, 1]} : vector<2x96xf32> to vector<2x32xf32>
    %198 = vector.extract_strided_slice %192 {offsets = [0, 32], sizes = [2, 32], strides = [1, 1]} : vector<2x96xf32> to vector<2x32xf32>
    %199 = vector.extract_strided_slice %192 {offsets = [0, 64], sizes = [2, 32], strides = [1, 1]} : vector<2x96xf32> to vector<2x32xf32>
    %200 = vector.extract_strided_slice %196 {offsets = [0, 0], sizes = [2, 32], strides = [1, 1]} : vector<2x96xf32> to vector<2x32xf32>
    %201 = vector.extract_strided_slice %196 {offsets = [0, 32], sizes = [2, 32], strides = [1, 1]} : vector<2x96xf32> to vector<2x32xf32>
    %202 = vector.extract_strided_slice %196 {offsets = [0, 64], sizes = [2, 32], strides = [1, 1]} : vector<2x96xf32> to vector<2x32xf32>
    %203 = arith.addf %197, %200 : vector<2x32xf32>
    %204 = arith.negf %203 : vector<2x32xf32>
    %205 = math.exp %204 : vector<2x32xf32>
    %cst_65 = arith.constant 1.000000e+00 : f32
    %206 = vector.broadcast %cst_65 : f32 to vector<2x32xf32>
    %207 = arith.addf %206, %205 : vector<2x32xf32>
    %208 = arith.divf %206, %207 : vector<2x32xf32>
    %209 = arith.addf %198, %201 : vector<2x32xf32>
    %210 = arith.negf %209 : vector<2x32xf32>
    %211 = math.exp %210 : vector<2x32xf32>
    %cst_66 = arith.constant 1.000000e+00 : f32
    %212 = vector.broadcast %cst_66 : f32 to vector<2x32xf32>
    %213 = arith.addf %212, %211 : vector<2x32xf32>
    %214 = arith.divf %212, %213 : vector<2x32xf32>
    %215 = arith.mulf %208, %202 : vector<2x32xf32>
    %216 = arith.addf %199, %215 : vector<2x32xf32>
    %217 = math.tanh %216 : vector<2x32xf32>
    %cst_67 = arith.constant 1.000000e+00 : f32
    %218 = vector.broadcast %cst_67 : f32 to vector<2x32xf32>
    %219 = arith.subf %218, %214 : vector<2x32xf32>
    %220 = arith.mulf %219, %217 : vector<2x32xf32>
    %221 = arith.mulf %214, %187 : vector<2x32xf32>
    %222 = arith.addf %220, %221 : vector<2x32xf32>
    %c5_68 = arith.constant 5 : index
    %c0_69 = arith.constant 0 : index
    %c0_70 = arith.constant 0 : index
    %223 = vector.load %arg7[%c5_68, %c0_69, %c0_70] : memref<8x2x32xf32, #tpu.memory_space<vmem>>, vector<1x2x32xf32>
    %224 = vector.shape_cast %223 : vector<1x2x32xf32> to vector<2x32xf32>
    %225 = vector.shape_cast %222 : vector<2x32xf32> to vector<1x2x32xf32>
    tpu.vector_store %arg7[%c5_68, %c0_69, %c0_70], %225 {strides = array<i32>} : memref<8x2x32xf32, #tpu.memory_space<vmem>>, vector<1x2x32xf32>,
    %c6 = arith.constant 6 : index
    %c0_71 = arith.constant 0 : index
    %c0_72 = arith.constant 0 : index
    %226 = vector.load %arg10[%c6, %c0_71, %c0_72] : memref<8x2x96xf32, #tpu.memory_space<vmem>>, vector<1x2x96xf32>
    %227 = vector.shape_cast %226 : vector<1x2x96xf32> to vector<2x96xf32>
    %228 = arith.truncf %222 : vector<2x32xf32> to vector<2x32xbf16>
    %cst_73 = arith.constant dense<0.000000e+00> : vector<2x96xf32>
    %229 = tpu.matmul %228, %13, %cst_73 {dimension_numbers = #tpu.dot_dimension_numbers<[1], [0], [0], [1], [0, 0, 1, 1], [], []>} : vector<2x32xbf16>, vector<32x96xbf16>, vector<2x96xf32> -> vector<2x96xf32>
    %230 = vector.broadcast %14 : vector<1x96xf32> to vector<2x96xf32>
    %231 = arith.addf %229, %230 : vector<2x96xf32>
    %232 = vector.extract_strided_slice %227 {offsets = [0, 0], sizes = [2, 32], strides = [1, 1]} : vector<2x96xf32> to vector<2x32xf32>
    %233 = vector.extract_strided_slice %227 {offsets = [0, 32], sizes = [2, 32], strides = [1, 1]} : vector<2x96xf32> to vector<2x32xf32>
    %234 = vector.extract_strided_slice %227 {offsets = [0, 64], sizes = [2, 32], strides = [1, 1]} : vector<2x96xf32> to vector<2x32xf32>
    %235 = vector.extract_strided_slice %231 {offsets = [0, 0], sizes = [2, 32], strides = [1, 1]} : vector<2x96xf32> to vector<2x32xf32>
    %236 = vector.extract_strided_slice %231 {offsets = [0, 32], sizes = [2, 32], strides = [1, 1]} : vector<2x96xf32> to vector<2x32xf32>
    %237 = vector.extract_strided_slice %231 {offsets = [0, 64], sizes = [2, 32], strides = [1, 1]} : vector<2x96xf32> to vector<2x32xf32>
    %238 = arith.addf %232, %235 : vector<2x32xf32>
    %239 = arith.negf %238 : vector<2x32xf32>
    %240 = math.exp %239 : vector<2x32xf32>
    %cst_74 = arith.constant 1.000000e+00 : f32
    %241 = vector.broadcast %cst_74 : f32 to vector<2x32xf32>
    %242 = arith.addf %241, %240 : vector<2x32xf32>
    %243 = arith.divf %241, %242 : vector<2x32xf32>
    %244 = arith.addf %233, %236 : vector<2x32xf32>
    %245 = arith.negf %244 : vector<2x32xf32>
    %246 = math.exp %245 : vector<2x32xf32>
    %cst_75 = arith.constant 1.000000e+00 : f32
    %247 = vector.broadcast %cst_75 : f32 to vector<2x32xf32>
    %248 = arith.addf %247, %246 : vector<2x32xf32>
    %249 = arith.divf %247, %248 : vector<2x32xf32>
    %250 = arith.mulf %243, %237 : vector<2x32xf32>
    %251 = arith.addf %234, %250 : vector<2x32xf32>
    %252 = math.tanh %251 : vector<2x32xf32>
    %cst_76 = arith.constant 1.000000e+00 : f32
    %253 = vector.broadcast %cst_76 : f32 to vector<2x32xf32>
    %254 = arith.subf %253, %249 : vector<2x32xf32>
    %255 = arith.mulf %254, %252 : vector<2x32xf32>
    %256 = arith.mulf %249, %222 : vector<2x32xf32>
    %257 = arith.addf %255, %256 : vector<2x32xf32>
    %c6_77 = arith.constant 6 : index
    %c0_78 = arith.constant 0 : index
    %c0_79 = arith.constant 0 : index
    %258 = vector.load %arg7[%c6_77, %c0_78, %c0_79] : memref<8x2x32xf32, #tpu.memory_space<vmem>>, vector<1x2x32xf32>
    %259 = vector.shape_cast %258 : vector<1x2x32xf32> to vector<2x32xf32>
    %260 = vector.shape_cast %257 : vector<2x32xf32> to vector<1x2x32xf32>
    tpu.vector_store %arg7[%c6_77, %c0_78, %c0_79], %260 {strides = array<i32>} : memref<8x2x32xf32, #tpu.memory_space<vmem>>, vector<1x2x32xf32>,
    %c7 = arith.constant 7 : index
    %c0_80 = arith.constant 0 : index
    %c0_81 = arith.constant 0 : index
    %261 = vector.load %arg10[%c7, %c0_80, %c0_81] : memref<8x2x96xf32, #tpu.memory_space<vmem>>, vector<1x2x96xf32>
    %262 = vector.shape_cast %261 : vector<1x2x96xf32> to vector<2x96xf32>
    %263 = arith.truncf %257 : vector<2x32xf32> to vector<2x32xbf16>
    %cst_82 = arith.constant dense<0.000000e+00> : vector<2x96xf32>
    %264 = tpu.matmul %263, %13, %cst_82 {dimension_numbers = #tpu.dot_dimension_numbers<[1], [0], [0], [1], [0, 0, 1, 1], [], []>} : vector<2x32xbf16>, vector<32x96xbf16>, vector<2x96xf32> -> vector<2x96xf32>
    %265 = vector.broadcast %14 : vector<1x96xf32> to vector<2x96xf32>
    %266 = arith.addf %264, %265 : vector<2x96xf32>
    %267 = vector.extract_strided_slice %262 {offsets = [0, 0], sizes = [2, 32], strides = [1, 1]} : vector<2x96xf32> to vector<2x32xf32>
    %268 = vector.extract_strided_slice %262 {offsets = [0, 32], sizes = [2, 32], strides = [1, 1]} : vector<2x96xf32> to vector<2x32xf32>
    %269 = vector.extract_strided_slice %262 {offsets = [0, 64], sizes = [2, 32], strides = [1, 1]} : vector<2x96xf32> to vector<2x32xf32>
    %270 = vector.extract_strided_slice %266 {offsets = [0, 0], sizes = [2, 32], strides = [1, 1]} : vector<2x96xf32> to vector<2x32xf32>
    %271 = vector.extract_strided_slice %266 {offsets = [0, 32], sizes = [2, 32], strides = [1, 1]} : vector<2x96xf32> to vector<2x32xf32>
    %272 = vector.extract_strided_slice %266 {offsets = [0, 64], sizes = [2, 32], strides = [1, 1]} : vector<2x96xf32> to vector<2x32xf32>
    %273 = arith.addf %267, %270 : vector<2x32xf32>
    %274 = arith.negf %273 : vector<2x32xf32>
    %275 = math.exp %274 : vector<2x32xf32>
    %cst_83 = arith.constant 1.000000e+00 : f32
    %276 = vector.broadcast %cst_83 : f32 to vector<2x32xf32>
    %277 = arith.addf %276, %275 : vector<2x32xf32>
    %278 = arith.divf %276, %277 : vector<2x32xf32>
    %279 = arith.addf %268, %271 : vector<2x32xf32>
    %280 = arith.negf %279 : vector<2x32xf32>
    %281 = math.exp %280 : vector<2x32xf32>
    %cst_84 = arith.constant 1.000000e+00 : f32
    %282 = vector.broadcast %cst_84 : f32 to vector<2x32xf32>
    %283 = arith.addf %282, %281 : vector<2x32xf32>
    %284 = arith.divf %282, %283 : vector<2x32xf32>
    %285 = arith.mulf %278, %272 : vector<2x32xf32>
    %286 = arith.addf %269, %285 : vector<2x32xf32>
    %287 = math.tanh %286 : vector<2x32xf32>
    %cst_85 = arith.constant 1.000000e+00 : f32
    %288 = vector.broadcast %cst_85 : f32 to vector<2x32xf32>
    %289 = arith.subf %288, %284 : vector<2x32xf32>
    %290 = arith.mulf %289, %287 : vector<2x32xf32>
    %291 = arith.mulf %284, %257 : vector<2x32xf32>
    %292 = arith.addf %290, %291 : vector<2x32xf32>
    %c7_86 = arith.constant 7 : index
    %c0_87 = arith.constant 0 : index
    %c0_88 = arith.constant 0 : index
    %293 = vector.load %arg7[%c7_86, %c0_87, %c0_88] : memref<8x2x32xf32, #tpu.memory_space<vmem>>, vector<1x2x32xf32>
    %294 = vector.shape_cast %293 : vector<1x2x32xf32> to vector<2x32xf32>
    %295 = vector.shape_cast %292 : vector<2x32xf32> to vector<1x2x32xf32>
    tpu.vector_store %arg7[%c7_86, %c0_87, %c0_88], %295 {strides = array<i32>} : memref<8x2x32xf32, #tpu.memory_space<vmem>>, vector<1x2x32xf32>,
    %c0_89 = arith.constant 0 : index
    %c0_90 = arith.constant 0 : index
    %296 = vector.load %arg9[%c0_89, %c0_90] : memref<2x32xf32, #tpu.memory_space<vmem>>, vector<2x32xf32>
    tpu.vector_store %arg9[%c0_89, %c0_90], %292 {strides = array<i32>} : memref<2x32xf32, #tpu.memory_space<vmem>>, vector<2x32xf32>,
    %c0_i32_91 = arith.constant 0 : i32
    %297 = arith.cmpi eq, %arg1, %c0_i32_91 : i32
    %298 = arith.extui %297 : i1 to i32
    %c0_i32_92 = arith.constant 0 : i32
    %299 = arith.cmpi ne, %298, %c0_i32_92 : i32
    scf.if %299 {
      %c0_93 = arith.constant 0 : index
      %c0_94 = arith.constant 0 : index
      %300 = vector.load %arg8[%c0_93, %c0_94] : memref<2x32xf32, #tpu.memory_space<vmem>>, vector<2x32xf32>
      tpu.vector_store %arg8[%c0_93, %c0_94], %292 {strides = array<i32>} : memref<2x32xf32, #tpu.memory_space<vmem>>, vector<2x32xf32>,
    } else {
    }
    return
  }
  func.func @transform_0(%arg0: i32, %arg1: i32) -> (i32, i32, i32) {
    %c0_i32 = arith.constant 0 : i32
    %c0_i32_0 = arith.constant 0 : i32
    return %arg1, %arg0, %c0_i32 : i32, i32, i32
  }
  func.func @transform_1(%arg0: i32, %arg1: i32) -> (i32, i32) {
    %c0_i32 = arith.constant 0 : i32
    %c0_i32_0 = arith.constant 0 : i32
    %c0_i32_1 = arith.constant 0 : i32
    return %c0_i32, %c0_i32_0 : i32, i32
  }
  func.func @transform_2(%arg0: i32, %arg1: i32) -> (i32, i32) {
    %c0_i32 = arith.constant 0 : i32
    %c0_i32_0 = arith.constant 0 : i32
    %c0_i32_1 = arith.constant 0 : i32
    return %c0_i32, %c0_i32_0 : i32, i32
  }
  func.func @transform_3(%arg0: i32, %arg1: i32) -> (i32, i32) {
    %c0_i32 = arith.constant 0 : i32
    %c0_i32_0 = arith.constant 0 : i32
    %c0_i32_1 = arith.constant 0 : i32
    return %c0_i32, %c0_i32_0 : i32, i32
  }
  func.func @transform_4(%arg0: i32, %arg1: i32) -> (i32, i32) {
    %c0_i32 = arith.constant 0 : i32
    %c0_i32_0 = arith.constant 0 : i32
    %c0_i32_1 = arith.constant 0 : i32
    return %c0_i32, %c0_i32_0 : i32, i32
  }
  func.func @transform_5(%arg0: i32, %arg1: i32) -> (i32, i32, i32) {
    %c0_i32 = arith.constant 0 : i32
    %c0_i32_0 = arith.constant 0 : i32
    return %arg1, %arg0, %c0_i32 : i32, i32, i32
  }
  func.func @transform_6(%arg0: i32, %arg1: i32) -> (i32, i32) {
    %c0_i32 = arith.constant 0 : i32
    %c0_i32_0 = arith.constant 0 : i32
    return %arg0, %c0_i32 : i32, i32
  }
}

</mosaic_0001>

<llo_original>
// kernel: tpu_custom_call.1
$region0: #{tpu_custom_call.1}
  #allocation0 [shape = 'u32[]', space=smem, size = 0x4, offset = 0x4, fixed_abs, tag = 'smem constant byte address 0x4 - core index']
  #allocation1 [shape = 'u32[144,128]{1,0:T(1,128)}', space=vmem, size = 0x12000, scoped, tag = 'internal scratch']
  #allocation2 [shape = 'f32[2,32]{1,0:T(2,128)}', space=vmem, size = 0x400, scoped, tag = 'scratch operand']
  #allocation3 [shape = 'f32[8,2,96]{2,1,0:T(2,128)}', space=vmem, size = 0x2000, scoped, tag = 'scratch operand']
  %s0 = inlined_call_operand.vmem [shape: f32[8,2,4], index: 0, kind: input, shape index: {}]
  %s1 = inlined_call_operand.vmem [shape: bf16[4,96], index: 1, kind: input, shape index: {}]
  %s2 = inlined_call_operand.vmem [shape: f32[1,96], index: 2, kind: input, shape index: {}]
  %s3 = inlined_call_operand.vmem [shape: bf16[32,96], index: 3, kind: input, shape index: {}]
  %s4 = inlined_call_operand.vmem [shape: f32[1,96], index: 4, kind: input, shape index: {}]
  %s5 = inlined_call_operand.hbm [shape: f32[8,2,32], index: 5, kind: output, shape index: {0}]
  %s6 = inlined_call_operand.hbm [shape: f32[2,32], index: 6, kind: output, shape index: {1}]
  %7 = xla_tuple %s5, %s6
  %s8 = sld [smem:[#allocation0]]
  $region46: #{tpu_custom_call.1} parent=0
    _
  %s10 = ssub.s32 1, %s8
  %s11 = scalar_select 0, %s10, %s8
  $region1: #{tpu_custom_call.1} parent=0
    #allocation4 [shape = 'u8[8192]{0}', space=vmem, size = 0x2000, scoped, tag = 'output window, operand 0, single buffered']
    #allocation5 [shape = 's32[1]{0}', space=sflag, size = 0x4, scoped, tag = 'scoped memory for tpu_custom_call.1']
    #allocation6 [shape = 'u8[1024]{0}', space=vmem, size = 0x400, scoped, tag = 'output window, operand 1, single buffered']
    #allocation7 [shape = 's32[1]{0}', space=sflag, size = 0x4, scoped, tag = 'scoped memory for tpu_custom_call.1']
    %12 = vsyncpa [#allocation5], 0
    %13 = vsyncpa [#allocation7], 0
    // Predicated region
    $region2: #{tpu_custom_call.1} parent=1 // pred_check
      _
    $region3: #{tpu_custom_call.1} parent=1 // pred_check_branch
      %15 = sbr.rel (0) target = $region5
    $region4: #{tpu_custom_call.1} parent=1 // pred_region
      _
    $region5: #{tpu_custom_call.1} parent=1 // pred_fallthru
      _
    // Predicated region
    $region6: #{tpu_custom_call.1} parent=1 // pred_check
      _
    $region7: #{tpu_custom_call.1} parent=1 // pred_check_branch
      %17 = sbr.rel (0) target = $region9
    $region8: #{tpu_custom_call.1} parent=1 // pred_region
      _
    $region9: #{tpu_custom_call.1} parent=1 // pred_fallthru
      _
    // Predicated region
    $region10: #{tpu_custom_call.1} parent=1 // pred_check
      _
    $region11: #{tpu_custom_call.1} parent=1 // pred_check_branch
      %19 = sbr.rel (0) target = $region13
    $region12: #{tpu_custom_call.1} parent=1 // pred_region
      _
    $region13: #{tpu_custom_call.1} parent=1 // pred_fallthru
      _
    // Predicated region
    $region14: #{tpu_custom_call.1} parent=1 // pred_check
      _
    $region15: #{tpu_custom_call.1} parent=1 // pred_check_branch
      %21 = sbr.rel (0) target = $region17
    $region16: #{tpu_custom_call.1} parent=1 // pred_region
      _
    $region17: #{tpu_custom_call.1} parent=1 // pred_fallthru
      _
    // Predicated region
    $region18: #{tpu_custom_call.1} parent=1 // pred_check
      _
    $region19: #{tpu_custom_call.1} parent=1 // pred_check_branch
      %23 = sbr.rel (0) target = $region21
    $region20: #{tpu_custom_call.1} parent=1 // pred_region
      _
    $region21: #{tpu_custom_call.1} parent=1 // pred_fallthru
      _
    %p25 = scmp.eq.s32.totalorder 0, 0
    // Predicated region
    $region22: #{tpu_custom_call.1} parent=1 // pred_check
      %p26 = pneg %p25
    $region23: #{tpu_custom_call.1} parent=1 // pred_check_branch
      %28 = sbr.rel (%p26) target = $region25
    $region24: #{tpu_custom_call.1} parent=1 // pred_region
      %vm29 = vcmask 254976
      %30 = vst.msk [vmem:[#allocation2] sm:$0x3] %vm29, 0.0
    $region25: #{tpu_custom_call.1} parent=1 // pred_fallthru
      _
    %v31 = vld [vmem:[%s0] sm:$0x3]
    %v32 = vld [vmem:[%s0 + $0x2] sm:$0x3]
    %v33 = vld [vmem:[%s0 + $0x4] sm:$0x3]
    %v34 = vld [vmem:[%s0 + $0x6] sm:$0x3]
    %v35 = vld [vmem:[%s0 + $0x8] sm:$0x3]
    %v36 = vld [vmem:[%s0 + $0xa] sm:$0x3]
    %v37 = vld [vmem:[%s0 + $0xc] sm:$0x3]
    %v38 = vld [vmem:[%s0 + $0xe] sm:$0x3]
    %v47 = vcombine.low %v31, %v32
    %v48 = vcombine.low %v33, %v34
    %v50 = vunpack.c.l.s4 1983009808
    %v51 = vunpack.c.0.s8 %v50
    %v52 = vlaneseq
    %v53 = vshrl.u32 %v52, 7
    %v54 = vsub.s32 %v51, %v53
    %v55 = vrot.slane %v47, %v54
    %v57 = vunpack.c.l.s4 1983009808
    %v58 = vunpack.c.0.s8 %v57
    %v59 = vlaneseq
    %v60 = vshrl.u32 %v59, 7
    %v61 = vsub.s32 %v58, %v60
    %v62 = vrot.slane %v48, %v61
    %v63 = vcombine.low %v55, %v62
    %v64 = vcombine.low %v35, %v36
    %v65 = vcombine.low %v37, %v38
    %v67 = vunpack.c.l.s4 1983009808
    %v68 = vunpack.c.0.s8 %v67
    %v69 = vlaneseq
    %v70 = vshrl.u32 %v69, 7
    %v71 = vsub.s32 %v68, %v70
    %v72 = vrot.slane %v64, %v71
    %v74 = vunpack.c.l.s4 1983009808
    %v75 = vunpack.c.0.s8 %v74
    %v76 = vlaneseq
    %v77 = vshrl.u32 %v76, 7
    %v78 = vsub.s32 %v75, %v77
    %v79 = vrot.slane %v65, %v78
    %v80 = vcombine.low %v72, %v79
    %v83 = vpack.c.bf16 %v80, %v63
    %v84 = vld [vmem:[%s1] sm:$0x3]
    %v85 = vld [vmem:[%s2] sm:$0x1]
    %v87 = vlaneseq
    %v88 = vshrl.u32 %v87, 7
    %v89 = vsub.s32 0, %v88
    %v90 = vrot.slane %v85, %v89
    %vm92 = vcmask 31744
    %v94 = vsel %vm92, %v83, 0
    %vm96 = vcmask 1041408
    %v98 = vsel %vm96, %v84, 0
    %100 = vmatprep.subr.bf16.mxu0 0
    %101 = vmatpush1.bf16.msra.mxu0 %v98
    %102 = vmatprep.subr.bf16.mxu0 0
    %103 = vmatpush1.bf16.msra.mxu0 0
    %104 = vmatprep.subr.bf16.mxu0 0
    %105 = vmatpush1.bf16.msra.mxu0 0
    %106 = vmatprep.subr.bf16.mxu0 0
    %107 = vmatpush1.bf16.msra.mxu0 0
    %108 = vmatprep.subr.bf16.mxu0 0
    %109 = vmatpush1.bf16.msra.mxu0 0
    %110 = vmatprep.subr.bf16.mxu0 0
    %111 = vmatpush1.bf16.msra.mxu0 0
    %112 = vmatprep.subr.bf16.mxu0 0
    %113 = vmatpush1.bf16.msra.mxu0 0
    %114 = vmatprep.subr.bf16.mxu0 0
    %115 = vmatpush1.bf16.msra.mxu0 0
    %116 = vmatprep.subr.bf16.mxu0 0
    %117 = vmatpush1.bf16.msra.mxu0 0
    %118 = vmatprep.subr.bf16.mxu0 0
    %119 = vmatpush1.bf16.msra.mxu0 0
    %120 = vmatprep.subr.bf16.mxu0 0
    %121 = vmatpush1.bf16.msra.mxu0 0
    %122 = vmatprep.subr.bf16.mxu0 0
    %123 = vmatpush1.bf16.msra.mxu0 0
    %124 = vmatprep.subr.bf16.mxu0 0
    %125 = vmatpush1.bf16.msra.mxu0 0
    %126 = vmatprep.subr.bf16.mxu0 0
    %127 = vmatpush1.bf16.msra.mxu0 0
    %128 = vmatprep.subr.bf16.mxu0 0
    %129 = vmatpush1.bf16.msra.mxu0 0
    %130 = vmatprep.subr.bf16.mxu0 0
    %131 = vmatpush1.bf16.msra.mxu0 0
    %132 = vmatprep.mubr.bf16.mxu0 0
    %133 = vmatmul.mubr.bf16.gmra.mrb[0].mxu0 %v94
    %v134 = vpop.f32.mrb[0].mxu0
    %v135 = vadd.f32 %v90, %v134
    %v136 = vpop.f32.mrb[0].mxu0
    %v137 = vpop.f32.mrb[0].mxu0
    %v138 = vadd.f32 %v90, %v137
    %v139 = vpop.f32.mrb[0].mxu0
    %140 = vdwg.mxu0
    %v143 = vcombine.high %v135, %v135
    %v145 = vunpack.c.l.s4 1983009808
    %v146 = vunpack.c.0.s8 %v145
    %v147 = vlaneseq
    %v148 = vshrl.u32 %v147, 7
    %v149 = vsub.s32 %v146, %v148
    %v150 = vrot.slane %v135, %v149
    %v152 = vunpack.c.l.s4 1983009808
    %v153 = vunpack.c.0.s8 %v152
    %v154 = vlaneseq
    %v155 = vshrl.u32 %v154, 7
    %v156 = vsub.s32 %v153, %v155
    %v157 = vrot.slane %v143, %v156
    %v158 = vcombine.high %v150, %v150
    %v159 = vcombine.high %v157, %v157
    %v160 = vcombine.high %v138, %v138
    %v162 = vunpack.c.l.s4 1983009808
    %v163 = vunpack.c.0.s8 %v162
    %v164 = vlaneseq
    %v165 = vshrl.u32 %v164, 7
    %v166 = vsub.s32 %v163, %v165
    %v167 = vrot.slane %v138, %v166
    %v169 = vunpack.c.l.s4 1983009808
    %v170 = vunpack.c.0.s8 %v169
    %v171 = vlaneseq
    %v172 = vshrl.u32 %v171, 7
    %v173 = vsub.s32 %v170, %v172
    %v174 = vrot.slane %v160, %v173
    %v175 = vcombine.high %v167, %v167
    %v176 = vcombine.high %v174, %v174
    %vm185 = vcmask 779264
    %186 = vst.msk [vmem:[#allocation3] sm:$0x3] %vm185, %v150
    %187 = vst.msk [vmem:[#allocation3 + $0x2] sm:$0x3] %vm185, %v158
    %188 = vst.msk [vmem:[#allocation3 + $0x4] sm:$0x3] %vm185, %v157
    %189 = vst.msk [vmem:[#allocation3 + $0x6] sm:$0x3] %vm185, %v159
    %190 = vst.msk [vmem:[#allocation3 + $0x8] sm:$0x3] %vm185, %v167
    %191 = vst.msk [vmem:[#allocation3 + $0xa] sm:$0x3] %vm185, %v175
    %192 = vst.msk [vmem:[#allocation3 + $0xc] sm:$0x3] %vm185, %v174
    %193 = vst.msk [vmem:[#allocation3 + $0xe] sm:$0x3] %vm185, %v176
    %v194 = vld [vmem:[%s3] sm:$0xf]
    %v195 = vld [vmem:[%s3 + $0x4] sm:$0xf]
    %v196 = vld [vmem:[%s3 + $0x8] sm:$0xf]
    %v197 = vld [vmem:[%s3 + $0xc] sm:$0xf]
    %v198 = vld [vmem:[%s4] sm:$0x1]
    %v199 = vld [vmem:[#allocation2] sm:$0x3]
    %v200 = vld [vmem:[#allocation3] sm:$0x3]
    %v201 = vpack.c.bf16 %v199, %v199
    %v203 = vlaneseq
    %v204 = vshrl.u32 %v203, 7
    %v205 = vsub.s32 0, %v204
    %v206 = vrot.slane %v198, %v205
    %v212 = vunpack.c.l.b16 %v194
    %v213 = vunpack.c.l.b16 %v195
    %v214 = vunpack.c.l.b16 %v196
    %v215 = vunpack.c.l.b16 %v197
    %v216 = vpack.c.b16 %v213, %v212
    %v217 = vpack.c.b16 %v215, %v214
    %vm220 = vcmask 261120
    %v222 = vsel %vm220, %v201, 0
    %224 = vmatprep.subr.bf16.mxu0 0
    %225 = vmatpush1.bf16.msra.mxu0 %v216
    %226 = vmatprep.subr.bf16.mxu0 0
    %227 = vmatpush1.bf16.msra.mxu0 %v217
    %228 = vmatprep.subr.bf16.mxu0 0
    %229 = vmatpush1.bf16.msra.mxu0 0
    %230 = vmatprep.subr.bf16.mxu0 0
    %231 = vmatpush1.bf16.msra.mxu0 0
    %232 = vmatprep.subr.bf16.mxu0 0
    %233 = vmatpush1.bf16.msra.mxu0 0
    %234 = vmatprep.subr.bf16.mxu0 0
    %235 = vmatpush1.bf16.msra.mxu0 0
    %236 = vmatprep.subr.bf16.mxu0 0
    %237 = vmatpush1.bf16.msra.mxu0 0
    %238 = vmatprep.subr.bf16.mxu0 0
    %239 = vmatpush1.bf16.msra.mxu0 0
    %240 = vmatprep.subr.bf16.mxu0 0
    %241 = vmatpush1.bf16.msra.mxu0 0
    %242 = vmatprep.subr.bf16.mxu0 0
    %243 = vmatpush1.bf16.msra.mxu0 0
    %244 = vmatprep.subr.bf16.mxu0 0
    %245 = vmatpush1.bf16.msra.mxu0 0
    %246 = vmatprep.subr.bf16.mxu0 0
    %247 = vmatpush1.bf16.msra.mxu0 0
    %248 = vmatprep.subr.bf16.mxu0 0
    %249 = vmatpush1.bf16.msra.mxu0 0
    %250 = vmatprep.subr.bf16.mxu0 0
    %251 = vmatpush1.bf16.msra.mxu0 0
    %252 = vmatprep.subr.bf16.mxu0 0
    %253 = vmatpush1.bf16.msra.mxu0 0
    %254 = vmatprep.subr.bf16.mxu0 0
    %255 = vmatpush1.bf16.msra.mxu0 0
    %256 = vmatprep.mubr.bf16.mxu0 0
    %257 = vmatmul.mubr.bf16.gmra.mrb[0].mxu0 %v222
    %v258 = vpop.f32.mrb[0].mxu0
    %v259 = vadd.f32 %v206, %v258
    %v260 = vpop.f32.mrb[0].mxu0
    %v261 = vpop.f32.mrb[0].mxu0
    %v262 = vpop.f32.mrb[0].mxu0
    %263 = vdwg.mxu0
    %v264 = vadd.f32 %v200, %v259
    %v265 = vxor.u32 %v264, 2147483648
    %v266 = vmul.f32 %v265, 1.442695
    %v267 = vpow.pop %v266
    %v268 = vadd.f32 %v267, 1.0
    %v269 = vrcp.pop %v268
    %v270 = vmul.f32 1.0, %v269
    %272 = vrot.lane.b32.xlu0 %v259, 64
    %v273 = vpop.permute.xlu0 %272
    %v275 = vmul.f32 %v270, %v273
    %277 = vrot.lane.b32.xlu0 %v275, 64
    %v278 = vpop.permute.xlu0 %277
    %v280 = vadd.f32 %v200, %v278
    %v281 = vtanh.pop %v280
    %v282 = vsub.f32 1.0, %v270
    %284 = vrot.lane.b32.xlu0 %v281, 96
    %v285 = vpop.permute.xlu0 %284
    %v287 = vmul.f32 %v282, %v285
    %289 = vrot.lane.b32.xlu0 %v199, 32
    %v290 = vpop.permute.xlu0 %289
    %v292 = vmul.f32 %v270, %v290
    %v293 = vadd.f32 %v287, %v292
    %295 = vrot.lane.b32.xlu0 %v293, 96
    %v296 = vpop.permute.xlu0 %295
    %vm298 = vcmask 254976
    %299 = vst.msk [vmem:[#allocation4] sm:$0x3] %vm298, %v296
    %s300 = scalar_lea.vmem [#allocation3], 2
    %v301 = vld [vmem:[%s300] sm:$0x3]
    %v302 = vpack.c.bf16 %v293, %v293
    %304 = vrot.lane.b32.xlu0 %v302, 96
    %v305 = vpop.permute.xlu0 %304
    %v307 = vsel %vm220, %v305, 0
    %309 = vmatprep.subr.bf16.mxu0 0
    %310 = vmatpush1.bf16.msra.mxu0 %v216
    %311 = vmatprep.subr.bf16.mxu0 0
    %312 = vmatpush1.bf16.msra.mxu0 %v217
    %313 = vmatprep.subr.bf16.mxu0 0
    %314 = vmatpush1.bf16.msra.mxu0 0
    %315 = vmatprep.subr.bf16.mxu0 0
    %316 = vmatpush1.bf16.msra.mxu0 0
    %317 = vmatprep.subr.bf16.mxu0 0
    %318 = vmatpush1.bf16.msra.mxu0 0
    %319 = vmatprep.subr.bf16.mxu0 0
    %320 = vmatpush1.bf16.msra.mxu0 0
    %321 = vmatprep.subr.bf16.mxu0 0
    %322 = vmatpush1.bf16.msra.mxu0 0
    %323 = vmatprep.subr.bf16.mxu0 0
    %324 = vmatpush1.bf16.msra.mxu0 0
    %325 = vmatprep.subr.bf16.mxu0 0
    %326 = vmatpush1.bf16.msra.mxu0 0
    %327 = vmatprep.subr.bf16.mxu0 0
    %328 = vmatpush1.bf16.msra.mxu0 0
    %329 = vmatprep.subr.bf16.mxu0 0
    %330 = vmatpush1.bf16.msra.mxu0 0
    %331 = vmatprep.subr.bf16.mxu0 0
    %332 = vmatpush1.bf16.msra.mxu0 0
    %333 = vmatprep.subr.bf16.mxu0 0
    %334 = vmatpush1.bf16.msra.mxu0 0
    %335 = vmatprep.subr.bf16.mxu0 0
    %336 = vmatpush1.bf16.msra.mxu0 0
    %337 = vmatprep.subr.bf16.mxu0 0
    %338 = vmatpush1.bf16.msra.mxu0 0
    %339 = vmatprep.subr.bf16.mxu0 0
    %340 = vmatpush1.bf16.msra.mxu0 0
    %341 = vmatprep.mubr.bf16.mxu0 0
    %342 = vmatmul.mubr.bf16.gmra.mrb[0].mxu0 %v307
    %v343 = vpop.f32.mrb[0].mxu0
    %v344 = vadd.f32 %v206, %v343
    %v345 = vpop.f32.mrb[0].mxu0
    %v346 = vpop.f32.mrb[0].mxu0
    %v347 = vpop.f32.mrb[0].mxu0
    %348 = vdwg.mxu0
    %v349 = vadd.f32 %v301, %v344
    %v350 = vxor.u32 %v349, 2147483648
    %v351 = vmul.f32 %v350, 1.442695
    %v352 = vpow.pop %v351
    %v353 = vadd.f32 %v352, 1.0
    %v354 = vrcp.pop %v353
    %v355 = vmul.f32 1.0, %v354
    %357 = vrot.lane.b32.xlu0 %v344, 64
    %v358 = vpop.permute.xlu0 %357
    %v360 = vmul.f32 %v355, %v358
    %362 = vrot.lane.b32.xlu0 %v360, 64
    %v363 = vpop.permute.xlu0 %362
    %v365 = vadd.f32 %v301, %v363
    %v366 = vtanh.pop %v365
    %v367 = vsub.f32 1.0, %v355
    %369 = vrot.lane.b32.xlu0 %v366, 96
    %v370 = vpop.permute.xlu0 %369
    %v372 = vmul.f32 %v367, %v370
    %v373 = vmul.f32 %v355, %v293
    %v374 = vadd.f32 %v372, %v373
    %376 = vrot.lane.b32.xlu0 %v374, 96
    %v377 = vpop.permute.xlu0 %376
    %s379 = scalar_lea.vmem [#allocation4], 2
    %380 = vst.msk [vmem:[%s379] sm:$0x3] %vm298, %v377
    %s381 = scalar_lea.vmem [#allocation3], 4
    %v382 = vld [vmem:[%s381] sm:$0x3]
    %v383 = vpack.c.bf16 %v374, %v374
    %385 = vrot.lane.b32.xlu0 %v383, 96
    %v386 = vpop.permute.xlu0 %385
    %v388 = vsel %vm220, %v386, 0
    %390 = vmatprep.subr.bf16.mxu0 0
    %391 = vmatpush1.bf16.msra.mxu0 %v216
    %392 = vmatprep.subr.bf16.mxu0 0
    %393 = vmatpush1.bf16.msra.mxu0 %v217
    %394 = vmatprep.subr.bf16.mxu0 0
    %395 = vmatpush1.bf16.msra.mxu0 0
    %396 = vmatprep.subr.bf16.mxu0 0
    %397 = vmatpush1.bf16.msra.mxu0 0
    %398 = vmatprep.subr.bf16.mxu0 0
    %399 = vmatpush1.bf16.msra.mxu0 0
    %400 = vmatprep.subr.bf16.mxu0 0
    %401 = vmatpush1.bf16.msra.mxu0 0
    %402 = vmatprep.subr.bf16.mxu0 0
    %403 = vmatpush1.bf16.msra.mxu0 0
    %404 = vmatprep.subr.bf16.mxu0 0
    %405 = vmatpush1.bf16.msra.mxu0 0
    %406 = vmatprep.subr.bf16.mxu0 0
    %407 = vmatpush1.bf16.msra.mxu0 0
    %408 = vmatprep.subr.bf16.mxu0 0
    %409 = vmatpush1.bf16.msra.mxu0 0
    %410 = vmatprep.subr.bf16.mxu0 0
    %411 = vmatpush1.bf16.msra.mxu0 0
    %412 = vmatprep.subr.bf16.mxu0 0
    %413 = vmatpush1.bf16.msra.mxu0 0
    %414 = vmatprep.subr.bf16.mxu0 0
    %415 = vmatpush1.bf16.msra.mxu0 0
    %416 = vmatprep.subr.bf16.mxu0 0
    %417 = vmatpush1.bf16.msra.mxu0 0
    %418 = vmatprep.subr.bf16.mxu0 0
    %419 = vmatpush1.bf16.msra.mxu0 0
    %420 = vmatprep.subr.bf16.mxu0 0
    %421 = vmatpush1.bf16.msra.mxu0 0
    %422 = vmatprep.mubr.bf16.mxu0 0
    %423 = vmatmul.mubr.bf16.gmra.mrb[0].mxu0 %v388
    %v424 = vpop.f32.mrb[0].mxu0
    %v425 = vadd.f32 %v206, %v424
    %v426 = vpop.f32.mrb[0].mxu0
    %v427 = vpop.f32.mrb[0].mxu0
    %v428 = vpop.f32.mrb[0].mxu0
    %429 = vdwg.mxu0
    %v430 = vadd.f32 %v382, %v425
    %v431 = vxor.u32 %v430, 2147483648
    %v432 = vmul.f32 %v431, 1.442695
    %v433 = vpow.pop %v432
    %v434 = vadd.f32 %v433, 1.0
    %v435 = vrcp.pop %v434
    %v436 = vmul.f32 1.0, %v435
    %438 = vrot.lane.b32.xlu0 %v425, 64
    %v439 = vpop.permute.xlu0 %438
    %v441 = vmul.f32 %v436, %v439
    %443 = vrot.lane.b32.xlu0 %v441, 64
    %v444 = vpop.permute.xlu0 %443
    %v446 = vadd.f32 %v382, %v444
    %v447 = vtanh.pop %v446
    %v448 = vsub.f32 1.0, %v436
    %450 = vrot.lane.b32.xlu0 %v447, 96
    %v451 = vpop.permute.xlu0 %450
    %v453 = vmul.f32 %v448, %v451
    %v454 = vmul.f32 %v436, %v374
    %v455 = vadd.f32 %v453, %v454
    %457 = vrot.lane.b32.xlu0 %v455, 96
    %v458 = vpop.permute.xlu0 %457
    %s460 = scalar_lea.vmem [#allocation4], 4
    %461 = vst.msk [vmem:[%s460] sm:$0x3] %vm298, %v458
    %s462 = scalar_lea.vmem [#allocation3], 6
    %v463 = vld [vmem:[%s462] sm:$0x3]
    %v464 = vpack.c.bf16 %v455, %v455
    %466 = vrot.lane.b32.xlu0 %v464, 96
    %v467 = vpop.permute.xlu0 %466
    %v469 = vsel %vm220, %v467, 0
    %471 = vmatprep.subr.bf16.mxu0 0
    %472 = vmatpush1.bf16.msra.mxu0 %v216
    %473 = vmatprep.subr.bf16.mxu0 0
    %474 = vmatpush1.bf16.msra.mxu0 %v217
    %475 = vmatprep.subr.bf16.mxu0 0
    %476 = vmatpush1.bf16.msra.mxu0 0
    %477 = vmatprep.subr.bf16.mxu0 0
    %478 = vmatpush1.bf16.msra.mxu0 0
    %479 = vmatprep.subr.bf16.mxu0 0
    %480 = vmatpush1.bf16.msra.mxu0 0
    %481 = vmatprep.subr.bf16.mxu0 0
    %482 = vmatpush1.bf16.msra.mxu0 0
    %483 = vmatprep.subr.bf16.mxu0 0
    %484 = vmatpush1.bf16.msra.mxu0 0
    %485 = vmatprep.subr.bf16.mxu0 0
    %486 = vmatpush1.bf16.msra.mxu0 0
    %487 = vmatprep.subr.bf16.mxu0 0
    %488 = vmatpush1.bf16.msra.mxu0 0
    %489 = vmatprep.subr.bf16.mxu0 0
    %490 = vmatpush1.bf16.msra.mxu0 0
    %491 = vmatprep.subr.bf16.mxu0 0
    %492 = vmatpush1.bf16.msra.mxu0 0
    %493 = vmatprep.subr.bf16.mxu0 0
    %494 = vmatpush1.bf16.msra.mxu0 0
    %495 = vmatprep.subr.bf16.mxu0 0
    %496 = vmatpush1.bf16.msra.mxu0 0
    %497 = vmatprep.subr.bf16.mxu0 0
    %498 = vmatpush1.bf16.msra.mxu0 0
    %499 = vmatprep.subr.bf16.mxu0 0
    %500 = vmatpush1.bf16.msra.mxu0 0
    %501 = vmatprep.subr.bf16.mxu0 0
    %502 = vmatpush1.bf16.msra.mxu0 0
    %503 = vmatprep.mubr.bf16.mxu0 0
    %504 = vmatmul.mubr.bf16.gmra.mrb[0].mxu0 %v469
    %v505 = vpop.f32.mrb[0].mxu0
    %v506 = vadd.f32 %v206, %v505
    %v507 = vpop.f32.mrb[0].mxu0
    %v508 = vpop.f32.mrb[0].mxu0
    %v509 = vpop.f32.mrb[0].mxu0
    %510 = vdwg.mxu0
    %v511 = vadd.f32 %v463, %v506
    %v512 = vxor.u32 %v511, 2147483648
    %v513 = vmul.f32 %v512, 1.442695
    %v514 = vpow.pop %v513
    %v515 = vadd.f32 %v514, 1.0
    %v516 = vrcp.pop %v515
    %v517 = vmul.f32 1.0, %v516
    %519 = vrot.lane.b32.xlu0 %v506, 64
    %v520 = vpop.permute.xlu0 %519
    %v522 = vmul.f32 %v517, %v520
    %524 = vrot.lane.b32.xlu0 %v522, 64
    %v525 = vpop.permute.xlu0 %524
    %v527 = vadd.f32 %v463, %v525
    %v528 = vtanh.pop %v527
    %v529 = vsub.f32 1.0, %v517
    %531 = vrot.lane.b32.xlu0 %v528, 96
    %v532 = vpop.permute.xlu0 %531
    %v534 = vmul.f32 %v529, %v532
    %v535 = vmul.f32 %v517, %v455
    %v536 = vadd.f32 %v534, %v535
    %538 = vrot.lane.b32.xlu0 %v536, 96
    %v539 = vpop.permute.xlu0 %538
    %s541 = scalar_lea.vmem [#allocation4], 6
    %542 = vst.msk [vmem:[%s541] sm:$0x3] %vm298, %v539
    %s543 = scalar_lea.vmem [#allocation3], 8
    %v544 = vld [vmem:[%s543] sm:$0x3]
    %v545 = vpack.c.bf16 %v536, %v536
    %547 = vrot.lane.b32.xlu0 %v545, 96
    %v548 = vpop.permute.xlu0 %547
    %v550 = vsel %vm220, %v548, 0
    %552 = vmatprep.subr.bf16.mxu0 0
    %553 = vmatpush1.bf16.msra.mxu0 %v216
    %554 = vmatprep.subr.bf16.mxu0 0
    %555 = vmatpush1.bf16.msra.mxu0 %v217
    %556 = vmatprep.subr.bf16.mxu0 0
    %557 = vmatpush1.bf16.msra.mxu0 0
    %558 = vmatprep.subr.bf16.mxu0 0
    %559 = vmatpush1.bf16.msra.mxu0 0
    %560 = vmatprep.subr.bf16.mxu0 0
    %561 = vmatpush1.bf16.msra.mxu0 0
    %562 = vmatprep.subr.bf16.mxu0 0
    %563 = vmatpush1.bf16.msra.mxu0 0
    %564 = vmatprep.subr.bf16.mxu0 0
    %565 = vmatpush1.bf16.msra.mxu0 0
    %566 = vmatprep.subr.bf16.mxu0 0
    %567 = vmatpush1.bf16.msra.mxu0 0
    %568 = vmatprep.subr.bf16.mxu0 0
    %569 = vmatpush1.bf16.msra.mxu0 0
    %570 = vmatprep.subr.bf16.mxu0 0
    %571 = vmatpush1.bf16.msra.mxu0 0
    %572 = vmatprep.subr.bf16.mxu0 0
    %573 = vmatpush1.bf16.msra.mxu0 0
    %574 = vmatprep.subr.bf16.mxu0 0
    %575 = vmatpush1.bf16.msra.mxu0 0
    %576 = vmatprep.subr.bf16.mxu0 0
    %577 = vmatpush1.bf16.msra.mxu0 0
    %578 = vmatprep.subr.bf16.mxu0 0
    %579 = vmatpush1.bf16.msra.mxu0 0
    %580 = vmatprep.subr.bf16.mxu0 0
    %581 = vmatpush1.bf16.msra.mxu0 0
    %582 = vmatprep.subr.bf16.mxu0 0
    %583 = vmatpush1.bf16.msra.mxu0 0
    %584 = vmatprep.mubr.bf16.mxu0 0
    %585 = vmatmul.mubr.bf16.gmra.mrb[0].mxu0 %v550
    %v586 = vpop.f32.mrb[0].mxu0
    %v587 = vadd.f32 %v206, %v586
    %v588 = vpop.f32.mrb[0].mxu0
    %v589 = vpop.f32.mrb[0].mxu0
    %v590 = vpop.f32.mrb[0].mxu0
    %591 = vdwg.mxu0
    %v592 = vadd.f32 %v544, %v587
    %v593 = vxor.u32 %v592, 2147483648
    %v594 = vmul.f32 %v593, 1.442695
    %v595 = vpow.pop %v594
    %v596 = vadd.f32 %v595, 1.0
    %v597 = vrcp.pop %v596
    %v598 = vmul.f32 1.0, %v597
    %600 = vrot.lane.b32.xlu0 %v587, 64
    %v601 = vpop.permute.xlu0 %600
    %v603 = vmul.f32 %v598, %v601
    %605 = vrot.lane.b32.xlu0 %v603, 64
    %v606 = vpop.permute.xlu0 %605
    %v608 = vadd.f32 %v544, %v606
    %v609 = vtanh.pop %v608
    %v610 = vsub.f32 1.0, %v598
    %612 = vrot.lane.b32.xlu0 %v609, 96
    %v613 = vpop.permute.xlu0 %612
    %v615 = vmul.f32 %v610, %v613
    %v616 = vmul.f32 %v598, %v536
    %v617 = vadd.f32 %v615, %v616
    %619 = vrot.lane.b32.xlu0 %v617, 96
    %v620 = vpop.permute.xlu0 %619
    %s622 = scalar_lea.vmem [#allocation4], 8
    %623 = vst.msk [vmem:[%s622] sm:$0x3] %vm298, %v620
    %s624 = scalar_lea.vmem [#allocation3], 10
    %v625 = vld [vmem:[%s624] sm:$0x3]
    %v626 = vpack.c.bf16 %v617, %v617
    %628 = vrot.lane.b32.xlu0 %v626, 96
    %v629 = vpop.permute.xlu0 %628
    %v631 = vsel %vm220, %v629, 0
    %633 = vmatprep.subr.bf16.mxu0 0
    %634 = vmatpush1.bf16.msra.mxu0 %v216
    %635 = vmatprep.subr.bf16.mxu0 0
    %636 = vmatpush1.bf16.msra.mxu0 %v217
    %637 = vmatprep.subr.bf16.mxu0 0
    %638 = vmatpush1.bf16.msra.mxu0 0
    %639 = vmatprep.subr.bf16.mxu0 0
    %640 = vmatpush1.bf16.msra.mxu0 0
    %641 = vmatprep.subr.bf16.mxu0 0
    %642 = vmatpush1.bf16.msra.mxu0 0
    %643 = vmatprep.subr.bf16.mxu0 0
    %644 = vmatpush1.bf16.msra.mxu0 0
    %645 = vmatprep.subr.bf16.mxu0 0
    %646 = vmatpush1.bf16.msra.mxu0 0
    %647 = vmatprep.subr.bf16.mxu0 0
    %648 = vmatpush1.bf16.msra.mxu0 0
    %649 = vmatprep.subr.bf16.mxu0 0
    %650 = vmatpush1.bf16.msra.mxu0 0
    %651 = vmatprep.subr.bf16.mxu0 0
    %652 = vmatpush1.bf16.msra.mxu0 0
    %653 = vmatprep.subr.bf16.mxu0 0
    %654 = vmatpush1.bf16.msra.mxu0 0
    %655 = vmatprep.subr.bf16.mxu0 0
    %656 = vmatpush1.bf16.msra.mxu0 0
    %657 = vmatprep.subr.bf16.mxu0 0
    %658 = vmatpush1.bf16.msra.mxu0 0
    %659 = vmatprep.subr.bf16.mxu0 0
    %660 = vmatpush1.bf16.msra.mxu0 0
    %661 = vmatprep.subr.bf16.mxu0 0
    %662 = vmatpush1.bf16.msra.mxu0 0
    %663 = vmatprep.subr.bf16.mxu0 0
    %664 = vmatpush1.bf16.msra.mxu0 0
    %665 = vmatprep.mubr.bf16.mxu0 0
    %666 = vmatmul.mubr.bf16.gmra.mrb[0].mxu0 %v631
    %v667 = vpop.f32.mrb[0].mxu0
    %v668 = vadd.f32 %v206, %v667
    %v669 = vpop.f32.mrb[0].mxu0
    %v670 = vpop.f32.mrb[0].mxu0
    %v671 = vpop.f32.mrb[0].mxu0
    %672 = vdwg.mxu0
    %v673 = vadd.f32 %v625, %v668
    %v674 = vxor.u32 %v673, 2147483648
    %v675 = vmul.f32 %v674, 1.442695
    %v676 = vpow.pop %v675
    %v677 = vadd.f32 %v676, 1.0
    %v678 = vrcp.pop %v677
    %v679 = vmul.f32 1.0, %v678
    %681 = vrot.lane.b32.xlu0 %v668, 64
    %v682 = vpop.permute.xlu0 %681
    %v684 = vmul.f32 %v679, %v682
    %686 = vrot.lane.b32.xlu0 %v684, 64
    %v687 = vpop.permute.xlu0 %686
    %v689 = vadd.f32 %v625, %v687
    %v690 = vtanh.pop %v689
    %v691 = vsub.f32 1.0, %v679
    %693 = vrot.lane.b32.xlu0 %v690, 96
    %v694 = vpop.permute.xlu0 %693
    %v696 = vmul.f32 %v691, %v694
    %v697 = vmul.f32 %v679, %v617
    %v698 = vadd.f32 %v696, %v697
    %700 = vrot.lane.b32.xlu0 %v698, 96
    %v701 = vpop.permute.xlu0 %700
    %s703 = scalar_lea.vmem [#allocation4], 10
    %704 = vst.msk [vmem:[%s703] sm:$0x3] %vm298, %v701
    %s705 = scalar_lea.vmem [#allocation3], 12
    %v706 = vld [vmem:[%s705] sm:$0x3]
    %v707 = vpack.c.bf16 %v698, %v698
    %709 = vrot.lane.b32.xlu0 %v707, 96
    %v710 = vpop.permute.xlu0 %709
    %v712 = vsel %vm220, %v710, 0
    %714 = vmatprep.subr.bf16.mxu0 0
    %715 = vmatpush1.bf16.msra.mxu0 %v216
    %716 = vmatprep.subr.bf16.mxu0 0
    %717 = vmatpush1.bf16.msra.mxu0 %v217
    %718 = vmatprep.subr.bf16.mxu0 0
    %719 = vmatpush1.bf16.msra.mxu0 0
    %720 = vmatprep.subr.bf16.mxu0 0
    %721 = vmatpush1.bf16.msra.mxu0 0
    %722 = vmatprep.subr.bf16.mxu0 0
    %723 = vmatpush1.bf16.msra.mxu0 0
    %724 = vmatprep.subr.bf16.mxu0 0
    %725 = vmatpush1.bf16.msra.mxu0 0
    %726 = vmatprep.subr.bf16.mxu0 0
    %727 = vmatpush1.bf16.msra.mxu0 0
    %728 = vmatprep.subr.bf16.mxu0 0
    %729 = vmatpush1.bf16.msra.mxu0 0
    %730 = vmatprep.subr.bf16.mxu0 0
    %731 = vmatpush1.bf16.msra.mxu0 0
    %732 = vmatprep.subr.bf16.mxu0 0
    %733 = vmatpush1.bf16.msra.mxu0 0
    %734 = vmatprep.subr.bf16.mxu0 0
    %735 = vmatpush1.bf16.msra.mxu0 0
    %736 = vmatprep.subr.bf16.mxu0 0
    %737 = vmatpush1.bf16.msra.mxu0 0
    %738 = vmatprep.subr.bf16.mxu0 0
    %739 = vmatpush1.bf16.msra.mxu0 0
    %740 = vmatprep.subr.bf16.mxu0 0
    %741 = vmatpush1.bf16.msra.mxu0 0
    %742 = vmatprep.subr.bf16.mxu0 0
    %743 = vmatpush1.bf16.msra.mxu0 0
    %744 = vmatprep.subr.bf16.mxu0 0
    %745 = vmatpush1.bf16.msra.mxu0 0
    %746 = vmatprep.mubr.bf16.mxu0 0
    %747 = vmatmul.mubr.bf16.gmra.mrb[0].mxu0 %v712
    %v748 = vpop.f32.mrb[0].mxu0
    %v749 = vadd.f32 %v206, %v748
    %v750 = vpop.f32.mrb[0].mxu0
    %v751 = vpop.f32.mrb[0].mxu0
    %v752 = vpop.f32.mrb[0].mxu0
    %753 = vdwg.mxu0
    %v754 = vadd.f32 %v706, %v749
    %v755 = vxor.u32 %v754, 2147483648
    %v756 = vmul.f32 %v755, 1.442695
    %v757 = vpow.pop %v756
    %v758 = vadd.f32 %v757, 1.0
    %v759 = vrcp.pop %v758
    %v760 = vmul.f32 1.0, %v759
    %762 = vrot.lane.b32.xlu0 %v749, 64
    %v763 = vpop.permute.xlu0 %762
    %v765 = vmul.f32 %v760, %v763
    %767 = vrot.lane.b32.xlu0 %v765, 64
    %v768 = vpop.permute.xlu0 %767
    %v770 = vadd.f32 %v706, %v768
    %v771 = vtanh.pop %v770
    %v772 = vsub.f32 1.0, %v760
    %774 = vrot.lane.b32.xlu0 %v771, 96
    %v775 = vpop.permute.xlu0 %774
    %v777 = vmul.f32 %v772, %v775
    %v778 = vmul.f32 %v760, %v698
    %v779 = vadd.f32 %v777, %v778
    %781 = vrot.lane.b32.xlu0 %v779, 96
    %v782 = vpop.permute.xlu0 %781
    %s784 = scalar_lea.vmem [#allocation4], 12
    %785 = vst.msk [vmem:[%s784] sm:$0x3] %vm298, %v782
    %s786 = scalar_lea.vmem [#allocation3], 14
    %v787 = vld [vmem:[%s786] sm:$0x3]
    %v788 = vpack.c.bf16 %v779, %v779
    %790 = vrot.lane.b32.xlu0 %v788, 96
    %v791 = vpop.permute.xlu0 %790
    %v793 = vsel %vm220, %v791, 0
    %795 = vmatprep.subr.bf16.mxu0 0
    %796 = vmatpush1.bf16.msra.mxu0 %v216
    %797 = vmatprep.subr.bf16.mxu0 0
    %798 = vmatpush1.bf16.msra.mxu0 %v217
    %799 = vmatprep.subr.bf16.mxu0 0
    %800 = vmatpush1.bf16.msra.mxu0 0
    %801 = vmatprep.subr.bf16.mxu0 0
    %802 = vmatpush1.bf16.msra.mxu0 0
    %803 = vmatprep.subr.bf16.mxu0 0
    %804 = vmatpush1.bf16.msra.mxu0 0
    %805 = vmatprep.subr.bf16.mxu0 0
    %806 = vmatpush1.bf16.msra.mxu0 0
    %807 = vmatprep.subr.bf16.mxu0 0
    %808 = vmatpush1.bf16.msra.mxu0 0
    %809 = vmatprep.subr.bf16.mxu0 0
    %810 = vmatpush1.bf16.msra.mxu0 0
    %811 = vmatprep.subr.bf16.mxu0 0
    %812 = vmatpush1.bf16.msra.mxu0 0
    %813 = vmatprep.subr.bf16.mxu0 0
    %814 = vmatpush1.bf16.msra.mxu0 0
    %815 = vmatprep.subr.bf16.mxu0 0
    %816 = vmatpush1.bf16.msra.mxu0 0
    %817 = vmatprep.subr.bf16.mxu0 0
    %818 = vmatpush1.bf16.msra.mxu0 0
    %819 = vmatprep.subr.bf16.mxu0 0
    %820 = vmatpush1.bf16.msra.mxu0 0
    %821 = vmatprep.subr.bf16.mxu0 0
    %822 = vmatpush1.bf16.msra.mxu0 0
    %823 = vmatprep.subr.bf16.mxu0 0
    %824 = vmatpush1.bf16.msra.mxu0 0
    %825 = vmatprep.subr.bf16.mxu0 0
    %826 = vmatpush1.bf16.msra.mxu0 0
    %827 = vmatprep.mubr.bf16.mxu0 0
    %828 = vmatmul.mubr.bf16.gmra.mrb[0].mxu0 %v793
    %v829 = vpop.f32.mrb[0].mxu0
    %v830 = vadd.f32 %v206, %v829
    %v831 = vpop.f32.mrb[0].mxu0
    %v832 = vpop.f32.mrb[0].mxu0
    %v833 = vpop.f32.mrb[0].mxu0
    %834 = vdwg.mxu0
    %v835 = vadd.f32 %v787, %v830
    %v836 = vxor.u32 %v835, 2147483648
    %v837 = vmul.f32 %v836, 1.442695
    %v838 = vpow.pop %v837
    %v839 = vadd.f32 %v838, 1.0
    %v840 = vrcp.pop %v839
    %v841 = vmul.f32 1.0, %v840
    %843 = vrot.lane.b32.xlu0 %v830, 64
    %v844 = vpop.permute.xlu0 %843
    %v846 = vmul.f32 %v841, %v844
    %848 = vrot.lane.b32.xlu0 %v846, 64
    %v849 = vpop.permute.xlu0 %848
    %v851 = vadd.f32 %v787, %v849
    %v852 = vtanh.pop %v851
    %v853 = vsub.f32 1.0, %v841
    %855 = vrot.lane.b32.xlu0 %v852, 96
    %v856 = vpop.permute.xlu0 %855
    %v858 = vmul.f32 %v853, %v856
    %v859 = vmul.f32 %v841, %v779
    %v860 = vadd.f32 %v858, %v859
    %862 = vrot.lane.b32.xlu0 %v860, 96
    %v863 = vpop.permute.xlu0 %862
    %s865 = scalar_lea.vmem [#allocation4], 14
    %866 = vst.msk [vmem:[%s865] sm:$0x3] %vm298, %v863
    %867 = vst.msk [vmem:[#allocation2] sm:$0x3] %vm298, %v863
    // Predicated region
    $region26: #{tpu_custom_call.1} parent=1 // pred_check
      %p868 = pneg %p25
    $region27: #{tpu_custom_call.1} parent=1 // pred_check_branch
      %870 = sbr.rel (%p868) target = $region29
    $region28: #{tpu_custom_call.1} parent=1 // pred_region
      %871 = vst.msk [vmem:[#allocation6] sm:$0x3] %vm298, %v863
    $region29: #{tpu_custom_call.1} parent=1 // pred_fallthru
      _
    // Predicated region
    $region30: #{tpu_custom_call.1} parent=1 // pred_check
      _
    $region31: #{tpu_custom_call.1} parent=1 // pred_check_branch
      %873 = sbr.rel (0) target = $region33
    $region32: #{tpu_custom_call.1} parent=1 // pred_region
      %s875 = ssub.s32 256, 256
      %876 = vsyncadd [#allocation5], %s875
      %s877 = sshll.u32 [#allocation4], 4
      %s878 = int_to_ptr.vmem [resolvable:$true] %s877
      %883 = dma.vmem_to_hbm [thread:$0]  %s878, 256, %s5, [#allocation5], 32, 32, 2
    $region33: #{tpu_custom_call.1} parent=1 // pred_fallthru
      _
    // Predicated region
    $region34: #{tpu_custom_call.1} parent=1 // pred_check
      _
    $region35: #{tpu_custom_call.1} parent=1 // pred_check_branch
      %885 = sbr.rel (0) target = $region37
    $region36: #{tpu_custom_call.1} parent=1 // pred_region
      %s887 = ssub.s32 32, 32
      %888 = vsyncadd [#allocation7], %s887
      %s890 = sshll.u32 [#allocation6], 4
      %s891 = int_to_ptr.vmem [resolvable:$true] %s890
      %893 = dma.vmem_to_hbm [thread:$0]  %s891, 32, %s6, [#allocation7]
    $region37: #{tpu_custom_call.1} parent=1 // pred_fallthru
      _
    // Predicated region
    $region38: #{tpu_custom_call.1} parent=1 // pred_check
      _
    $region39: #{tpu_custom_call.1} parent=1 // pred_check_branch
      %895 = sbr.rel (0) target = $region41
    $region40: #{tpu_custom_call.1} parent=1 // pred_region
      %896 = dma.done [#allocation5], 256
    $region41: #{tpu_custom_call.1} parent=1 // pred_fallthru
      _
    // Predicated region
    $region42: #{tpu_custom_call.1} parent=1 // pred_check
      _
    $region43: #{tpu_custom_call.1} parent=1 // pred_check_branch
      %898 = sbr.rel (0) target = $region45
    $region44: #{tpu_custom_call.1} parent=1 // pred_region
      %899 = dma.done [#allocation7], 32
    $region45: #{tpu_custom_call.1} parent=1 // pred_fallthru
      _
    %900 = vsyncpa [#allocation5], 1
    %901 = vsyncpa [#allocation7], 1

</llo_original>
